<compile_context>
chip_gen: v5e
topology: v5e:2x2
jax: 0.10.0
libtpu: 0.0.40
codegen_flags: <defaults>
</compile_context>

<pallas_src>
import functools

import jax
import jax.numpy as jnp
from jax.experimental import pallas as pl
from jax.experimental.pallas import tpu as pltpu

ACT_LINEAR, ACT_LEAKY, ACT_RELU6 = 0, 1, 2

ANCHORS_13 = [(116, 90), (156, 198), (373, 326)]
ANCHORS_26 = [(30, 61), (62, 45), (59, 119)]
ANCHORS_52 = [(10, 13), (16, 30), (33, 23)]
NUM_CLASSES = 80

# Scoped-VMEM budget: below v7x's 64 MiB physical, extra headroom on v5e/v6e (128 MiB).
_VMEM_LIMIT = 48 * 1024 * 1024
_TH_DW = 32                      # max output-row tile for the stride-1 depthwise kernel
_TH_DW_S2 = 16                   # max output-row tile for the stride-2 depthwise kernel


def _apply_act(y, act):
    if act == ACT_LEAKY:
        return jnp.where(y > 0, y, 0.1 * y)
    if act == ACT_RELU6:
        return jnp.clip(y, 0.0, 6.0)
    return y


def _round_up(x, m):
    return (x + m - 1) // m * m


def _pick_tile(dpad, candidates):
    for t in candidates:
        if dpad % t == 0:
            return t
    return candidates[-1]


def _cplan(c):
    """Channel padding / tiling plan for the depthwise kernels.

    C >= 96 is padded to a multiple of 128 so output stores are lane-dense (unmasked vst)
    and split into 128-lane blocks (>=2 channel blocks -> work for both v7x TensorCores).
    Very small channel counts (the first 32-ch depthwise at the largest resolution) are kept
    unpadded: a 4x lane pad would quadruple HBM traffic on a memory-bound layer.
    """
    if c < 96:
        return c, c
    cp = _round_up(c, 128)
    return cp, 128


# ----------------------------------------------------------------------------------
# Pallas kernel 1: tiled matmul with fused folded-BN affine + activation epilogue.
# bf16 MXU operands, f32 accumulator, f32 epilogue.  Covers every 1x1 conv and
# (via im2col) every dense 3x3 conv in the network.
# ----------------------------------------------------------------------------------
def _mm_kernel_acc(a_ref, b_ref, s_ref, bias_ref, o_ref, acc_ref, *, act):
    k = pl.program_id(2)

    @pl.when(k == 0)
    def _():
        acc_ref[...] = jnp.zeros_like(acc_ref)

    acc_ref[...] += jnp.dot(a_ref[...], b_ref[...], preferred_element_type=jnp.float32)

    @pl.when(k == pl.num_programs(2) - 1)
    def _():
        y = acc_ref[...] * s_ref[...] + bias_ref[...]
        o_ref[...] = _apply_act(y, act).astype(o_ref.dtype)


def _mm_kernel_single(a_ref, b_ref, s_ref, bias_ref, o_ref, *, act):
    # Single K step: skip the accumulator scratch round-trip entirely.
    y = jnp.dot(a_ref[...], b_ref[...], preferred_element_type=jnp.float32)
    y = y * s_ref[...] + bias_ref[...]
    o_ref[...] = _apply_act(y, act).astype(o_ref.dtype)


def matmul_affine_act(a, w, scale, bias, act, out_dtype=jnp.bfloat16):
    """(M,K) @ (K,N), then y*scale + bias (per output channel), then activation."""
    M, K = a.shape
    K2, N = w.shape
    assert K == K2

    # M tiling: always a multiple of 128 (full MXU passes); prefer 512-wide tiles for the
    # big memory-bound early 1x1 convs (~85% of HBM roofline vs ~63% at 256).
    if M >= 3072:
        tm = 512
        Mp = _round_up(M, 512)
    else:
        Mp = _round_up(M, 128)
        tm = _pick_tile(Mp, (512, 256, 128))
    # K / N tiling: up to 512-wide (fewer j tiles -> fewer redundant A reads).
    Kp = _round_up(K, 128)
    tk = _pick_tile(Kp, (512, 384, 256, 128))
    Np = _round_up(N, 128)
    tn = _pick_tile(Np, (512, 384, 256, 128))
    # v7x megacore: if a small layer would produce a single (i,j) block, split N so both
    # TensorCores get work (cheap: the A tile re-read is tiny at these sizes).
    if Mp // tm == 1 and Np // tn == 1 and Np >= 256:
        tn = Np // 2 if (Np // 2) % 128 == 0 else 128
    nk = Kp // tk

    a_p = jnp.pad(a, ((0, Mp - M), (0, Kp - K))).astype(jnp.bfloat16)
    w_p = jnp.pad(w, ((0, Kp - K), (0, Np - N))).astype(jnp.bfloat16)
    s_p = jnp.pad(scale.reshape(1, -1).astype(jnp.float32), ((0, 0), (0, Np - N)))
    b_p = jnp.pad(bias.reshape(1, -1).astype(jnp.float32), ((0, 0), (0, Np - N)))

    in_specs = [
        pl.BlockSpec((tm, tk), lambda i, j, k: (i, k)),
        pl.BlockSpec((tk, tn), lambda i, j, k: (k, j)),
        pl.BlockSpec((1, tn), lambda i, j, k: (0, j)),
        pl.BlockSpec((1, tn), lambda i, j, k: (0, j)),
    ]
    out_spec = pl.BlockSpec((tm, tn), lambda i, j, k: (i, j))

    if nk == 1:
        kernel = functools.partial(_mm_kernel_single, act=act)
        scratch = []
    else:
        kernel = functools.partial(_mm_kernel_acc, act=act)
        scratch = [pltpu.VMEM((tm, tn), jnp.float32)]

    out = pl.pallas_call(
        kernel,
        out_shape=jax.ShapeDtypeStruct((Mp, Np), out_dtype),
        grid_spec=pltpu.PrefetchScalarGridSpec(
            num_scalar_prefetch=0,
            grid=(Mp // tm, Np // tn, nk),
            in_specs=in_specs,
            out_specs=out_spec,
            scratch_shapes=scratch),
        compiler_params=pltpu.CompilerParams(
            dimension_semantics=("parallel", "parallel", "arbitrary"),
            vmem_limit_bytes=_VMEM_LIMIT),
    )(a_p, w_p, s_p, b_p)
    return out[:M, :N]


# ----------------------------------------------------------------------------------
# Pallas kernel 2: stride-1 depthwise 3x3 conv with fused affine + activation.
# Grid over (batch, output-row tiles, channel blocks); 2-row halo per row tile.
# Operands stay bf16; each tap's product is upcast into the f32 accumulator
# (half the load/store-slot traffic of an up-front f32 plane copy).
# ----------------------------------------------------------------------------------
def _dw_s1_kernel(x_ref, w_ref, s_ref, b_ref, o_ref, *, act, th, wo):
    x = x_ref[0, 0]                           # (th+2, Wp, tc) bf16, no full f32 copy
    w = w_ref[...]                            # (9, tc) bf16, loaded once
    acc = jnp.zeros((th, wo, x.shape[-1]), jnp.float32)
    for kx in range(3):
        # one W-shift per kx (3 misaligned bf16 slices instead of 9 f32 ones);
        # ky slices are whole-plane selections along the major dim (cheap).
        col = x[:, kx:kx + wo, :]             # (th+2, Wo, tc) bf16
        for ky in range(3):
            acc += (col[ky:ky + th] * w[3 * ky + kx, :]).astype(jnp.float32)
    y = acc * s_ref[0, :] + b_ref[0, :]
    o_ref[0, 0] = _apply_act(y, act).astype(o_ref.dtype)


def _depthwise3x3_padded_s1(xp, w, scale, bias, act, out_dtype=jnp.bfloat16):
    """xp is already spatially padded; computes the 'valid' 3x3 depthwise conv."""
    B, Hp, Wp, C = xp.shape
    Ho, Wo = Hp - 2, Wp - 2
    Cp, tc = _cplan(C)
    if Cp != C:
        xp = jnp.pad(xp, ((0, 0), (0, 0), (0, 0), (0, Cp - C)))
        w = jnp.pad(w, ((0, 0), (0, 0), (0, Cp - C)))
        scale = jnp.pad(scale, (0, Cp - C))
        bias = jnp.pad(bias, (0, Cp - C))
    w9 = w.reshape(9, Cp).astype(jnp.bfloat16)
    s_p = scale.reshape(1, -1).astype(jnp.float32)
    b_p = bias.reshape(1, -1).astype(jnp.float32)

    if Ho <= _TH_DW:
        th, n_h = Ho, 1
        xw = xp[:, None]                                   # (B,1,Hp,Wp,Cp), no copy
    else:
        th = _TH_DW
        n_h = pl.cdiv(Ho, th)
        need = n_h * th + 2
        if need > Hp:
            xp = jnp.pad(xp, ((0, 0), (0, need - Hp), (0, 0), (0, 0)))
        # overlapping row windows with 2-row halo (small (th+2)/th copy overhead)
        xw = jnp.stack([jax.lax.dynamic_slice_in_dim(xp, h * th, th + 2, axis=1)
                        for h in range(n_h)], axis=1)       # (B,n_h,th+2,Wp,Cp)
    xw = xw.astype(jnp.bfloat16)

    out = pl.pallas_call(
        functools.partial(_dw_s1_kernel, act=act, th=th, wo=Wo),
        out_shape=jax.ShapeDtypeStruct((B, n_h, th, Wo, Cp), out_dtype),
        grid_spec=pltpu.PrefetchScalarGridSpec(
            num_scalar_prefetch=0,
            grid=(B, n_h, Cp // tc),
            in_specs=[
                pl.BlockSpec((1, 1, th + 2, Wp, tc), lambda b, h, c: (b, h, 0, 0, c)),
                pl.BlockSpec((9, tc), lambda b, h, c: (0, c)),
                pl.BlockSpec((1, tc), lambda b, h, c: (0, c)),
                pl.BlockSpec((1, tc), lambda b, h, c: (0, c)),
            ],
            out_specs=pl.BlockSpec((1, 1, th, Wo, tc), lambda b, h, c: (b, h, 0, 0, c)),
        ),
        compiler_params=pltpu.CompilerParams(
            dimension_semantics=("parallel", "parallel", "parallel"),
            vmem_limit_bytes=_VMEM_LIMIT),
    )(xw, w9, s_p, b_p)
    return out.reshape(B, n_h * th, Wo, Cp)[:, :Ho, :, :C]


# ----------------------------------------------------------------------------------
# Pallas kernel 3: stride-2 depthwise 3x3 conv.  Taps pre-gathered at stride 2 in glue;
# all 9 taps are reduced in one grid step (weights resident, no accumulator revisits),
# row-tiled over the output height to bound VMEM.
# ----------------------------------------------------------------------------------
def _dw_s2_kernel(t_ref, w_ref, s_ref, b_ref, o_ref, *, act):
    w = w_ref[...]                              # (9, tc) bf16, resident for the step
    acc = None
    for t in range(9):
        term = (t_ref[t, 0] * w[t, :]).astype(jnp.float32)   # (th, Wo, tc)
        acc = term if acc is None else acc + term
    y = acc * s_ref[0, :] + b_ref[0, :]
    o_ref[0] = _apply_act(y, act).astype(o_ref.dtype)


def _depthwise3x3_s2(x, w, scale, bias, act, out_dtype=jnp.bfloat16):
    B, H, W, C = x.shape
    Ho, Wo = (H + 1) // 2, (W + 1) // 2
    Cp, tc = _cplan(C)
    xp = jnp.pad(x, ((0, 0), (1, 1), (1, 1), (0, Cp - C)))
    wp = jnp.pad(w, ((0, 0), (0, 0), (0, Cp - C)))
    sp = jnp.pad(scale, (0, Cp - C)).reshape(1, -1).astype(jnp.float32)
    bp = jnp.pad(bias, (0, Cp - C)).reshape(1, -1).astype(jnp.float32)

    # TODO(synk): taps are still pre-gathered in glue (~2.25x input HBM traffic); in-kernel
    #             stride-2 reads of the padded input would eliminate this round trip.
    taps = [jax.lax.slice(xp, (0, ky, kx, 0),
                          (B, ky + 2 * (Ho - 1) + 1, kx + 2 * (Wo - 1) + 1, Cp),
                          (1, 2, 2, 1))
            for ky in range(3) for kx in range(3)]
    tap_arr = jnp.stack(taps, axis=0).astype(jnp.bfloat16)   # (9, B, Ho, Wo, Cp)
    w9 = wp.reshape(9, Cp).astype(jnp.bfloat16)

    # Output-row tiling (bounds the 9-tap block + output well under v7x's VMEM).
    th = Ho if Ho <= _TH_DW_S2 else _pick_tile(Ho, (16, 13, 8, 4))
    Hop = _round_up(Ho, th)
    if Hop != Ho:
        tap_arr = jnp.pad(tap_arr, ((0, 0), (0, 0), (0, Hop - Ho), (0, 0), (0, 0)))
    n_h = Hop // th

    out = pl.pallas_call(
        functools.partial(_dw_s2_kernel, act=act),
        out_shape=jax.ShapeDtypeStruct((B, Hop, Wo, Cp), out_dtype),
        grid_spec=pltpu.PrefetchScalarGridSpec(
            num_scalar_prefetch=0,
            grid=(B, n_h, Cp // tc),
            in_specs=[
                pl.BlockSpec((9, 1, th, Wo, tc), lambda b, h, c: (0, b, h, 0, c)),
                pl.BlockSpec((9, tc), lambda b, h, c: (0, c)),
                pl.BlockSpec((1, tc), lambda b, h, c: (0, c)),
                pl.BlockSpec((1, tc), lambda b, h, c: (0, c)),
            ],
            out_specs=pl.BlockSpec((1, th, Wo, tc), lambda b, h, c: (b, h, 0, c)),
        ),
        compiler_params=pltpu.CompilerParams(
            dimension_semantics=("parallel", "parallel", "parallel"),
            vmem_limit_bytes=_VMEM_LIMIT),
    )(tap_arr, w9, sp, bp)
    return out[:, :Ho, :, :C]


def depthwise3x3(x, w, scale, bias, stride, act, out_dtype=jnp.bfloat16):
    if stride == 1:
        xp = jnp.pad(x, ((0, 0), (1, 1), (1, 1), (0, 0)))
        return _depthwise3x3_padded_s1(xp, w, scale, bias, act, out_dtype)
    return _depthwise3x3_s2(x, w, scale, bias, act, out_dtype)


def depthwise_transpose2x(x, w, bias, out_dtype=jnp.bfloat16):
    """nn.ConvTranspose2d(C, C, 3, stride=2, padding=1, output_padding=1, groups=C)."""
    B, H, W, C = x.shape
    xd = jnp.zeros((B, 2 * H - 1, 2 * W - 1, C), x.dtype).at[:, ::2, ::2, :].set(x)
    xp = jnp.pad(xd, ((0, 0), (1, 2), (1, 2), (0, 0)))   # pad = k-1-p / k-1-p+out_pad
    w_flip = w[::-1, ::-1, :]                            # transposed conv == flipped kernel
    ones = jnp.ones((C,), jnp.float32)
    return _depthwise3x3_padded_s1(xp, w_flip, ones, bias, ACT_LINEAR, out_dtype)


# ----------------------------------------------------------------------------------
# JAX glue: im2col and conv wrappers (patches stay in bf16)
# ----------------------------------------------------------------------------------
def im2col3x3(x, stride):
    B, H, W, C = x.shape
    xp = jnp.pad(x, ((0, 0), (1, 1), (1, 1), (0, 0)))
    Ho = (H - 1) // stride + 1
    Wo = (W - 1) // stride + 1
    cols = []
    for ky in range(3):
        for kx in range(3):
            cols.append(jax.lax.slice(
                xp, (0, ky, kx, 0),
                (B, ky + (Ho - 1) * stride + 1, kx + (Wo - 1) * stride + 1, C),
                (1, stride, stride, 1)))
    patches = jnp.stack(cols, axis=3)            # (B, Ho, Wo, 9, C)
    return patches.reshape(B * Ho * Wo, 9 * C), Ho, Wo


def apply_pw(x, p, act, out_dtype=jnp.bfloat16):
    B, H, W, C = x.shape
    y = matmul_affine_act(x.reshape(B * H * W, C), p['w'], p['scale'], p['bias'],
                          act, out_dtype)
    return y.reshape(B, H, W, -1)


def apply_conv3(x, p, stride, act, out_dtype=jnp.bfloat16):
    B, H, W, C = x.shape
    a, Ho, Wo = im2col3x3(x, stride)
    w = p['w'].reshape(9 * C, -1)
    y = matmul_affine_act(a, w, p['scale'], p['bias'], act, out_dtype)
    return y.reshape(B, Ho, Wo, -1)


# ----------------------------------------------------------------------------------
# Parameter builders (deterministic synthetic init; BN folded to scale/bias)
# ----------------------------------------------------------------------------------
def _key_stream(key):
    while True:
        key, sub = jax.random.split(key)
        yield sub


def _bn_fold(kg, c):
    scale = 1.0 + 0.1 * jax.random.normal(next(kg), (c,), jnp.float32)
    bias = 0.05 * jax.random.normal(next(kg), (c,), jnp.float32)
    return scale, bias


def p_pw_bn(kg, cin, cout):           # 1x1 conv + BN (+ activation applied by caller)
    w = 0.1 * jax.random.normal(next(kg), (cin, cout), jnp.float32)
    s, b = _bn_fold(kg, cout)
    return {'w': w, 'scale': s, 'bias': b}


def p_conv3_bn(kg, cin, cout):        # 3x3 conv + BN
    w = 0.05 * jax.random.normal(next(kg), (3, 3, cin, cout), jnp.float32)
    s, b = _bn_fold(kg, cout)
    return {'w': w, 'scale': s, 'bias': b}


def p_dw_bn(kg, c):                   # depthwise 3x3 conv + BN
    w = 0.1 * jax.random.normal(next(kg), (3, 3, c), jnp.float32)
    s, b = _bn_fold(kg, c)
    return {'w': w, 'scale': s, 'bias': b}


def p_pw_bias(kg, cin, cout):         # plain 1x1 conv with bias (no BN, no act)
    w = 0.05 * jax.random.normal(next(kg), (cin, cout), jnp.float32)
    b = 0.05 * jax.random.normal(next(kg), (cout,), jnp.float32)
    return {'w': w, 'scale': jnp.ones((cout,), jnp.float32), 'bias': b}


def p_inverted_residual(kg, cin, cout, stride, expand):
    hidden = cin * expand
    return {
        'stride': stride,
        'use_res': stride == 1 and cin == cout,
        'expand': p_pw_bn(kg, cin, hidden) if expand != 1 else None,
        'dw': p_dw_bn(kg, hidden),
        'project': p_pw_bn(kg, hidden, cout),
    }


def apply_ir(x, p):
    y = x
    if p['expand'] is not None:
        y = apply_pw(y, p['expand'], ACT_RELU6)
    y = depthwise3x3(y, p['dw']['w'], p['dw']['scale'], p['dw']['bias'],
                     p['stride'], ACT_RELU6)
    y = apply_pw(y, p['project'], ACT_LINEAR)
    if p['use_res']:
        y = y + x
    return y


def p_extend(kg, cin, cout):
    # assumed extend_layers = 1x1 DBL -> 3x3 DBL -> 1x1 DBL (conv+BN+LeakyReLU each)
    return [('pw', p_pw_bn(kg, cin, cout)),
            ('c3', p_conv3_bn(kg, cout, cout)),
            ('pw', p_pw_bn(kg, cout, cout))]


def apply_extend(x, ps):
    for kind, p in ps:
        x = apply_pw(x, p, ACT_LEAKY) if kind == 'pw' else apply_conv3(x, p, 1, ACT_LEAKY)
    return x


def p_output(kg, cin, cout):
    # assumed output_layers = 3x3 DBL (cin -> 2*cin) + plain 1x1 conv (2*cin -> cout)
    return {'c3': p_conv3_bn(kg, cin, 2 * cin), 'head': p_pw_bias(kg, 2 * cin, cout)}


def apply_output(x, p):
    x = apply_conv3(x, p['c3'], 1, ACT_LEAKY)
    return apply_pw(x, p['head'], ACT_LINEAR, out_dtype=jnp.float32)


def p_up(kg, cin, cout):
    return {'pw': p_pw_bn(kg, cin, cout),
            'dwT_w': 0.1 * jax.random.normal(next(kg), (3, 3, cout), jnp.float32),
            'dwT_b': 0.05 * jax.random.normal(next(kg), (cout,), jnp.float32)}


def apply_up(x, p):
    x = apply_pw(x, p['pw'], ACT_LEAKY)
    return depthwise_transpose2x(x, p['dwT_w'], p['dwT_b'])


def build_params(key):
    kg = _key_stream(key)
    params = {}
    params['conv0'] = p_conv3_bn(kg, 3, 32)                       # conv_dbl(3, 32, 2)
    params['trunk52'] = [p_inverted_residual(kg, 32, 16, 1, 1),
                         p_inverted_residual(kg, 16, 24, 2, 6),
                         p_inverted_residual(kg, 24, 24, 1, 6),
                         p_inverted_residual(kg, 24, 32, 2, 6),
                         p_inverted_residual(kg, 32, 32, 1, 6)]
    params['trunk26'] = [p_inverted_residual(kg, 32, 64, 2, 6),
                         p_inverted_residual(kg, 64, 64, 1, 6),
                         p_inverted_residual(kg, 64, 64, 1, 6),
                         p_inverted_residual(kg, 64, 64, 1, 6)]
    params['trunk13'] = [p_inverted_residual(kg, 64, 96, 1, 6),
                         p_inverted_residual(kg, 96, 96, 1, 6),
                         p_inverted_residual(kg, 96, 96, 1, 6),
                         p_inverted_residual(kg, 96, 160, 2, 6),
                         p_inverted_residual(kg, 160, 160, 1, 6),
                         p_inverted_residual(kg, 160, 160, 1, 6)]
    params['conEt1'] = p_extend(kg, 160, 512)
    params['conOp1'] = p_output(kg, 512, 255)
    params['conUp1'] = p_up(kg, 512, 256)
    params['conEt2'] = p_extend(kg, 320, 256)
    params['conOp2'] = p_output(kg, 256, 255)
    params['conUp2'] = p_up(kg, 256, 128)
    params['conEt3'] = p_extend(kg, 160, 256)
    params['conOp3'] = p_output(kg, 256, 255)
    return params


# ----------------------------------------------------------------------------------
# YOLO decode (targets=None branch) -- elementwise post-processing, kept in JAX glue.
# ----------------------------------------------------------------------------------
def yolo_decode(x_nhwc, anchors, num_classes, img_dim):
    x = jnp.transpose(x_nhwc, (0, 3, 1, 2))        # NCHW, mirrors the torch .view path
    B, _, g, _ = x.shape
    nA = len(anchors)
    pred = x.reshape(B, nA, num_classes + 5, g, g).transpose(0, 1, 3, 4, 2)
    sig = jax.nn.sigmoid
    px, py = sig(pred[..., 0]), sig(pred[..., 1])
    pw, ph = pred[..., 2], pred[..., 3]
    conf = sig(pred[..., 4])
    cls = sig(pred[..., 5:])
    stride = img_dim / g
    grid_x = jnp.arange(g, dtype=jnp.float32).reshape(1, 1, 1, g)
    grid_y = jnp.arange(g, dtype=jnp.float32).reshape(1, 1, g, 1)
    anc = jnp.array(anchors, dtype=jnp.float32) / stride
    aw = anc[:, 0].reshape(1, nA, 1, 1)
    ah = anc[:, 1].reshape(1, nA, 1, 1)
    boxes = jnp.stack([px + grid_x, py + grid_y,
                       jnp.exp(pw) * aw, jnp.exp(ph) * ah], axis=-1)
    return jnp.concatenate([boxes.reshape(B, -1, 4) * stride,
                            conf.reshape(B, -1, 1),
                            cls.reshape(B, -1, num_classes)], axis=-1)


# ----------------------------------------------------------------------------------
# Full MobileNet forward (targets=None -> losses are 0)
# ----------------------------------------------------------------------------------
def mobilenet_forward(params, x_nchw):
    img_dim = x_nchw.shape[2]
    x = jnp.transpose(x_nchw, (0, 2, 3, 1)).astype(jnp.bfloat16)   # NCHW -> NHWC, bf16
    x = apply_conv3(x, params['conv0'], 2, ACT_LEAKY)
    for p in params['trunk52']:
        x = apply_ir(x, p)
    xR52 = x
    for p in params['trunk26']:
        x = apply_ir(x, p)
    xR26 = x
    for p in params['trunk13']:
        x = apply_ir(x, p)
    x = apply_extend(x, params['conEt1'])
    xOp13 = apply_output(x, params['conOp1'])
    x = apply_up(x, params['conUp1'])
    x = jnp.concatenate([x, xR26], axis=-1)
    x = apply_extend(x, params['conEt2'])
    xOp26 = apply_output(x, params['conOp2'])
    x = apply_up(x, params['conUp2'])
    x = jnp.concatenate([x, xR52], axis=-1)
    x = apply_extend(x, params['conEt3'])
    xOp52 = apply_output(x, params['conOp3'])
    out13 = yolo_decode(xOp13, ANCHORS_13, NUM_CLASSES, img_dim)
    out26 = yolo_decode(xOp26, ANCHORS_26, NUM_CLASSES, img_dim)
    out52 = yolo_decode(xOp52, ANCHORS_52, NUM_CLASSES, img_dim)
    return [out13, out26, out52], 0.0


if __name__ == "__main__":
    key = jax.random.PRNGKey(0)
    pkey, xkey = jax.random.split(key)
    params = build_params(pkey)
    # small input consistent with the module: NCHW, 3 channels, 64x64 (divisible by 32)
    x = jax.random.normal(xkey, (2, 3, 64, 64), jnp.float32)
    (out13, out26, out52), total_loss = mobilenet_forward(params, x)
    jax.block_until_ready((out13, out26, out52))
    assert out13.shape == (2, 3 * 2 * 2, NUM_CLASSES + 5)
    assert out26.shape == (2, 3 * 4 * 4, NUM_CLASSES + 5)
    assert out52.shape == (2, 3 * 8 * 8, NUM_CLASSES + 5)
    assert total_loss == 0.0
    print("KERNEL_OK")
</pallas_src>

<mosaic_0001>
module attributes {stable_mosaic.version = 11 : i64} {
  func.func @_mm_kernel_single(%arg0: i32, %arg1: i32, %arg2: i32, %arg3: memref<512x128xbf16, #tpu.memory_space<vmem>>, %arg4: memref<128x128xbf16, #tpu.memory_space<vmem>>, %arg5: memref<1x128xf32, #tpu.memory_space<vmem>>, %arg6: memref<1x128xf32, #tpu.memory_space<vmem>>, %arg7: memref<512x128xbf16, #tpu.memory_space<vmem>>) attributes {dimension_semantics = [#tpu.dimension_semantics<parallel>, #tpu.dimension_semantics<parallel>, #tpu.dimension_semantics<arbitrary>], iteration_bounds = array<i64: 4, 1, 1>, scalar_prefetch = 0 : i64, scratch_operands = 0 : i64, tpu.core_type = #tpu.core_type<tc>, window_params = [{transform_indices = @transform_0, window_bounds = array<i64: 512, 128>}, {transform_indices = @transform_1, window_bounds = array<i64: 128, 128>}, {transform_indices = @transform_2, window_bounds = array<i64: 1, 128>}, {transform_indices = @transform_3, window_bounds = array<i64: 1, 128>}, {transform_indices = @transform_4, window_bounds = array<i64: 512, 128>}]} {
    %c0 = arith.constant 0 : index
    %c0_0 = arith.constant 0 : index
    %0 = vector.load %arg3[%c0, %c0_0] : memref<512x128xbf16, #tpu.memory_space<vmem>>, vector<512x128xbf16>
    %c0_1 = arith.constant 0 : index
    %c0_2 = arith.constant 0 : index
    %1 = vector.load %arg4[%c0_1, %c0_2] : memref<128x128xbf16, #tpu.memory_space<vmem>>, vector<128x128xbf16>
    %cst = arith.constant dense<0.000000e+00> : vector<512x128xf32>
    %2 = tpu.matmul %0, %1, %cst {dimension_numbers = #tpu.dot_dimension_numbers<[1], [0], [0], [1], [0, 0, 1, 1], [], []>} : vector<512x128xbf16>, vector<128x128xbf16>, vector<512x128xf32> -> vector<512x128xf32>
    %c0_3 = arith.constant 0 : index
    %c0_4 = arith.constant 0 : index
    %3 = vector.load %arg5[%c0_3, %c0_4] : memref<1x128xf32, #tpu.memory_space<vmem>>, vector<1x128xf32>
    %4 = vector.broadcast %3 : vector<1x128xf32> to vector<512x128xf32>
    %5 = arith.mulf %2, %4 : vector<512x128xf32>
    %c0_5 = arith.constant 0 : index
    %c0_6 = arith.constant 0 : index
    %6 = vector.load %arg6[%c0_5, %c0_6] : memref<1x128xf32, #tpu.memory_space<vmem>>, vector<1x128xf32>
    %7 = vector.broadcast %6 : vector<1x128xf32> to vector<512x128xf32>
    %8 = arith.addf %5, %7 : vector<512x128xf32>
    %cst_7 = arith.constant 0.000000e+00 : f32
    %9 = vector.broadcast %cst_7 : f32 to vector<512x128xf32>
    %10 = arith.cmpf ogt, %8, %9 : vector<512x128xf32>
    %cst_8 = arith.constant 1.000000e-01 : f32
    %11 = vector.broadcast %cst_8 : f32 to vector<512x128xf32>
    %12 = arith.mulf %11, %8 : vector<512x128xf32>
    %13 = arith.select %10, %8, %12 : vector<512x128xi1>, vector<512x128xf32>
    %14 = arith.truncf %13 : vector<512x128xf32> to vector<512x128xbf16>
    %c0_9 = arith.constant 0 : index
    %c0_10 = arith.constant 0 : index
    %15 = vector.load %arg7[%c0_9, %c0_10] : memref<512x128xbf16, #tpu.memory_space<vmem>>, vector<512x128xbf16>
    tpu.vector_store %arg7[%c0_9, %c0_10], %14 {strides = array<i32>} : memref<512x128xbf16, #tpu.memory_space<vmem>>, vector<512x128xbf16>,
    return
  }
  func.func @transform_0(%arg0: i32, %arg1: i32, %arg2: i32) -> (i32, i32) {
    %c0_i32 = arith.constant 0 : i32
    return %arg0, %arg2 : i32, i32
  }
  func.func @transform_1(%arg0: i32, %arg1: i32, %arg2: i32) -> (i32, i32) {
    %c0_i32 = arith.constant 0 : i32
    return %arg2, %arg1 : i32, i32
  }
  func.func @transform_2(%arg0: i32, %arg1: i32, %arg2: i32) -> (i32, i32) {
    %c0_i32 = arith.constant 0 : i32
    %c0_i32_0 = arith.constant 0 : i32
    return %c0_i32, %arg1 : i32, i32
  }
  func.func @transform_3(%arg0: i32, %arg1: i32, %arg2: i32) -> (i32, i32) {
    %c0_i32 = arith.constant 0 : i32
    %c0_i32_0 = arith.constant 0 : i32
    return %c0_i32, %arg1 : i32, i32
  }
  func.func @transform_4(%arg0: i32, %arg1: i32, %arg2: i32) -> (i32, i32) {
    %c0_i32 = arith.constant 0 : i32
    return %arg0, %arg1 : i32, i32
  }
}

</mosaic_0001>

<llo_original>
// kernel: tpu_custom_call.1
$region0: #{tpu_custom_call.1}
  #allocation0 [shape = 'u32[]', space=smem, size = 0x4, offset = 0x4, fixed_abs, tag = 'smem constant byte address 0x4 - core index']
  #allocation1 [shape = 'u32[72,128]{1,0:T(1,128)}', space=vmem, size = 0x9000, scoped, tag = 'internal scratch']
  %s0 = inlined_call_operand.hbm [shape: bf16[2048,128], index: 0, kind: input, shape index: {}]
  %s1 = inlined_call_operand.hbm [shape: bf16[128,128], index: 1, kind: input, shape index: {}]
  %s2 = inlined_call_operand.vmem [shape: f32[1,128], index: 2, kind: input, shape index: {}]
  %s3 = inlined_call_operand.vmem [shape: f32[1,128], index: 3, kind: input, shape index: {}]
  %s4 = inlined_call_operand.hbm [shape: bf16[2048,128], index: 4, kind: output, shape index: {}]
  %s5 = sld [smem:[#allocation0]]
  $region57: #{tpu_custom_call.1} parent=0
    _
  %s7 = ssub.s32 1, %s5
  %s8 = scalar_select 0, %s7, %s5
  $region1: #{tpu_custom_call.1} parent=0
    #allocation2 [shape = 'u8[262144]{0}', space=vmem, size = 0x40000, scoped, tag = 'input window, operand 0']
    #allocation3 [shape = 's32[2]{0}', space=sflag, size = 0x8, scoped, tag = 'scoped memory for tpu_custom_call.1']
    #allocation4 [shape = 's32[2]{0}', space=sflag, size = 0x8, scoped, tag = 'scoped memory for tpu_custom_call.1']
    #allocation5 [shape = 'u8[32768]{0}', space=vmem, size = 0x8000, scoped, tag = 'input window, operand 1, single buffered']
    #allocation6 [shape = 's32[1]{0}', space=sflag, size = 0x4, scoped, tag = 'scoped memory for tpu_custom_call.1']
    #allocation7 [shape = 'u8[262144]{0}', space=vmem, size = 0x40000, scoped, tag = 'output window, operand 0']
    %9 = vsyncpa [#allocation3], 0
    %s10 = scalar_lea.sflag [#allocation3], 1
    %11 = vsyncpa %s10, 0
    %12 = vsyncpa [#allocation6], 0
    %13 = vsyncpa [#allocation4], 0
    %s14 = scalar_lea.sflag [#allocation4], 1
    %15 = vsyncpa %s14, 0
    loop: start=0, step=1, limit=6
    $region2: #{tpu_custom_call.1} parent=1 // loop_pre_header
      _
    $region3: #{tpu_custom_call.1} parent=1 // loop_header
      %s17 = sphi 0, %s21
      %p18 = scmp.ge.s32.totalorder %s17, 6
      %s24 = sphi 0, %s43
      %s25 = sphi 0, %s39
      %s26 = sphi 0, %s35
      %s27 = sphi 0, %s24
      %s28 = sphi 0, %s25
      %s29 = sphi 0, %s26
      %s30 = sphi 0, %s27
      %s31 = sphi 0, %s28
      %s32 = sphi 0, %s29
      %s48 = sphi 0, %s50
      %s51 = sphi 0, %s48
      %s52 = sphi 0, %s51
      %s68 = sphi 0, %s52
      %s76 = sphi 0, %s78
      %s79 = sphi 0, %s76
      %s80 = sphi 0, %s79
      %s96 = sphi 0, %s80
      %s102 = sphi 0, %s104
      %s105 = sphi 0, %s102
      %s106 = sphi 0, %s105
      %s122 = sphi 0, %s106
      %s128 = sphi 0, %s130
      %s131 = sphi 0, %s128
      %s132 = sphi 0, %s131
      %s148 = sphi 0, %s132
      %s156 = sphi 0, %s158
      %s159 = sphi 0, %s156
      %s160 = sphi 0, %s159
      %s176 = sphi 0, %s160
    $region4: #{tpu_custom_call.1} parent=1 // loop_header_branch
      %20 = sbr.rel (%p18) target = $region8
    $region5: #{tpu_custom_call.1} parent=1 // loop_body
      %s22 = ssub.s32 %s17, 1
      %s23 = ssub.s32 %s17, 2
      %s33 = sadd.s32 1, %s26
      %p34 = scmp.ge.s32.totalorder %s33, 1
      %s35 = scalar_select %p34, 0, %s33
      %s36 = sadd.s32 1, %s25
      %s37 = scalar_select %p34, %s36, %s25
      %p38 = scmp.ge.s32.totalorder %s37, 1
      %s39 = scalar_select %p38, 0, %s37
      %s40 = sadd.s32 1, %s24
      %s41 = scalar_select %p38, %s40, %s24
      %p42 = scmp.ge.s32.totalorder %s41, 4
      %s43 = scalar_select %p42, 0, %s41
      %s44 = ssub.s32 %s24, %s43
      %s45 = ssub.s32 %s26, %s35
      %s46 = sor.u32 %s44, %s45
      %p47 = scmp.eq.s32.totalorder %s46, 0
      %s49 = sadd.s32 %s48, 1
      %s50 = scalar_select %p47, %s48, %s49
      %p53 = pneg %p47
      %p54 = scmp.eq.s32.totalorder %s17, 3
      %p55 = por %p53, %p54
      %p56 = scmp.ne.s32.totalorder %s48, %s51
      %p57 = scmp.eq.s32.totalorder %s17, 0
      %p58 = por %p56, %p57
      %p59 = scmp.ne.s32.totalorder %s48, %s51
      %p60 = scmp.eq.s32.totalorder %s22, 3
      %p61 = por %p59, %p60
      %p62 = scmp.ne.s32.totalorder %s51, %s52
      %p63 = scmp.eq.s32.totalorder %s22, 0
      %p64 = por %p62, %p63
      %p65 = scmp.ne.s32.totalorder %s51, %s52
      %p66 = scmp.eq.s32.totalorder %s23, 3
      %p67 = por %p65, %p66
      %p69 = scmp.ne.s32.totalorder %s52, %s68
      %p70 = scmp.eq.s32.totalorder %s23, 0
      %p71 = por %p69, %p70
      %s72 = ssub.s32 %s26, %s35
      %s73 = ssub.s32 %s25, %s39
      %s74 = sor.u32 %s72, %s73
      %p75 = scmp.eq.s32.totalorder %s74, 0
      %s77 = sadd.s32 %s76, 1
      %s78 = scalar_select %p75, %s76, %s77
      %p81 = pneg %p75
      %p82 = scmp.eq.s32.totalorder %s17, 3
      %p83 = por %p81, %p82
      %p84 = scmp.ne.s32.totalorder %s76, %s79
      %p85 = scmp.eq.s32.totalorder %s17, 0
      %p86 = por %p84, %p85
      %p87 = scmp.ne.s32.totalorder %s76, %s79
      %p88 = scmp.eq.s32.totalorder %s22, 3
      %p89 = por %p87, %p88
      %p90 = scmp.ne.s32.totalorder %s79, %s80
      %p91 = scmp.eq.s32.totalorder %s22, 0
      %p92 = por %p90, %p91
      %p93 = scmp.ne.s32.totalorder %s79, %s80
      %p94 = scmp.eq.s32.totalorder %s23, 3
      %p95 = por %p93, %p94
      %p97 = scmp.ne.s32.totalorder %s80, %s96
      %p98 = scmp.eq.s32.totalorder %s23, 0
      %p99 = por %p97, %p98
      %s100 = ssub.s32 %s25, %s39
      %p101 = scmp.eq.s32.totalorder %s100, 0
      %s103 = sadd.s32 %s102, 1
      %s104 = scalar_select %p101, %s102, %s103
      %p107 = pneg %p101
      %p108 = scmp.eq.s32.totalorder %s17, 3
      %p109 = por %p107, %p108
      %p110 = scmp.ne.s32.totalorder %s102, %s105
      %p111 = scmp.eq.s32.totalorder %s17, 0
      %p112 = por %p110, %p111
      %p113 = scmp.ne.s32.totalorder %s102, %s105
      %p114 = scmp.eq.s32.totalorder %s22, 3
      %p115 = por %p113, %p114
      %p116 = scmp.ne.s32.totalorder %s105, %s106
      %p117 = scmp.eq.s32.totalorder %s22, 0
      %p118 = por %p116, %p117
      %p119 = scmp.ne.s32.totalorder %s105, %s106
      %p120 = scmp.eq.s32.totalorder %s23, 3
      %p121 = por %p119, %p120
      %p123 = scmp.ne.s32.totalorder %s106, %s122
      %p124 = scmp.eq.s32.totalorder %s23, 0
      %p125 = por %p123, %p124
      %s126 = ssub.s32 %s25, %s39
      %p127 = scmp.eq.s32.totalorder %s126, 0
      %s129 = sadd.s32 %s128, 1
      %s130 = scalar_select %p127, %s128, %s129
      %p133 = pneg %p127
      %p134 = scmp.eq.s32.totalorder %s17, 3
      %p135 = por %p133, %p134
      %p136 = scmp.ne.s32.totalorder %s128, %s131
      %p137 = scmp.eq.s32.totalorder %s17, 0
      %p138 = por %p136, %p137
      %p139 = scmp.ne.s32.totalorder %s128, %s131
      %p140 = scmp.eq.s32.totalorder %s22, 3
      %p141 = por %p139, %p140
      %p142 = scmp.ne.s32.totalorder %s131, %s132
      %p143 = scmp.eq.s32.totalorder %s22, 0
      %p144 = por %p142, %p143
      %p145 = scmp.ne.s32.totalorder %s131, %s132
      %p146 = scmp.eq.s32.totalorder %s23, 3
      %p147 = por %p145, %p146
      %p149 = scmp.ne.s32.totalorder %s132, %s148
      %p150 = scmp.eq.s32.totalorder %s23, 0
      %p151 = por %p149, %p150
      %s152 = ssub.s32 %s24, %s43
      %s153 = ssub.s32 %s25, %s39
      %s154 = sor.u32 %s152, %s153
      %p155 = scmp.eq.s32.totalorder %s154, 0
      %s157 = sadd.s32 %s156, 1
      %s158 = scalar_select %p155, %s156, %s157
      %p161 = pneg %p155
      %p162 = scmp.eq.s32.totalorder %s17, 3
      %p163 = por %p161, %p162
      %p164 = scmp.ne.s32.totalorder %s156, %s159
      %p165 = scmp.eq.s32.totalorder %s17, 0
      %p166 = por %p164, %p165
      %p167 = scmp.ne.s32.totalorder %s156, %s159
      %p168 = scmp.eq.s32.totalorder %s22, 3
      %p169 = por %p167, %p168
      %p170 = scmp.ne.s32.totalorder %s159, %s160
      %p171 = scmp.eq.s32.totalorder %s22, 0
      %p172 = por %p170, %p171
      %p173 = scmp.ne.s32.totalorder %s159, %s160
      %p174 = scmp.eq.s32.totalorder %s23, 3
      %p175 = por %p173, %p174
      %p177 = scmp.ne.s32.totalorder %s160, %s176
      %p178 = scmp.eq.s32.totalorder %s23, 0
      %p179 = por %p177, %p178
      %p180 = scmp.le.s32.totalorder 1, %s17
      %p181 = scmp.lt.s32.totalorder %s17, 5
      %p182 = pnand %p180, %p181
      %p183 = pneg %p182
      // Predicated region
      $region9: #{tpu_custom_call.1} parent=5 // pred_check
        _
      $region10: #{tpu_custom_call.1} parent=5 // pred_check_branch
        %185 = sbr.rel (%p182) target = $region12
      $region11: #{tpu_custom_call.1} parent=5 // pred_region
        %s186 = ssub.s32 %s17, 1
        // Predicated region
        $region13: #{tpu_custom_call.1} parent=11 // pred_check
          %p187 = pneg %p92
        $region14: #{tpu_custom_call.1} parent=11 // pred_check_branch
          %189 = sbr.rel (%p187) target = $region16
        $region15: #{tpu_custom_call.1} parent=11 // pred_region
          %s190 = smul.u32 16, %s29
          %192 = vsyncadd [#allocation6], 0
          %s193 = sadd.s32 %s28, %s190
          %s194 = smul.addr %s193, 4
          %s195 = scalar_lea.hbm %s1, %s194
          %s196 = sshll.u32 %s195, 4
          %s197 = int_to_ptr.hbm [resolvable:$true] %s196
          %s198 = sshll.u32 [#allocation5], 4
          %s199 = int_to_ptr.vmem [resolvable:$true] %s198
          %204 = dma.hbm_to_vmem [thread:$0]  %s197, 1024, %s199, [#allocation6], 64, 64, 4
        $region16: #{tpu_custom_call.1} parent=11 // pred_fallthru
          _
        // Predicated region
        $region17: #{tpu_custom_call.1} parent=11 // pred_check
          %p205 = pneg %p118
        $region18: #{tpu_custom_call.1} parent=11 // pred_check_branch
          %207 = sbr.rel (%p205) target = $region20
        $region19: #{tpu_custom_call.1} parent=11 // pred_region
          %p208 = scmp.lt.s32.totalorder %s28, 0
          %s209 = scalar_select %p208, %s28, 0
          %s210 = scalar_lea.vmem %s2, %s209
        $region20: #{tpu_custom_call.1} parent=11 // pred_fallthru
          _
        // Predicated region
        $region21: #{tpu_custom_call.1} parent=11 // pred_check
          %p211 = pneg %p144
        $region22: #{tpu_custom_call.1} parent=11 // pred_check_branch
          %213 = sbr.rel (%p211) target = $region24
        $region23: #{tpu_custom_call.1} parent=11 // pred_region
          %p214 = scmp.lt.s32.totalorder %s28, 0
          %s215 = scalar_select %p214, %s28, 0
          %s216 = scalar_lea.vmem %s3, %s215
        $region24: #{tpu_custom_call.1} parent=11 // pred_fallthru
          _
      $region12: #{tpu_custom_call.1} parent=5 // pred_fallthru
        _
      %p217 = scmp.lt.s32.totalorder %s17, 4
      // Predicated region
      $region25: #{tpu_custom_call.1} parent=5 // pred_check
        %p218 = pneg %p217
      $region26: #{tpu_custom_call.1} parent=5 // pred_check_branch
        %220 = sbr.rel (%p218) target = $region28
      $region27: #{tpu_custom_call.1} parent=5 // pred_region
        // Predicated region
        $region29: #{tpu_custom_call.1} parent=27 // pred_check
          %p221 = pneg %p58
        $region30: #{tpu_custom_call.1} parent=27 // pred_check_branch
          %223 = sbr.rel (%p221) target = $region32
        $region31: #{tpu_custom_call.1} parent=27 // pred_region
          %s224 = sand.u32 %s48, 1
          %s225 = scalar_lea.sflag [#allocation3], %s224
          %s226 = sand.u32 %s48, 1
          %s227 = smul.addr %s226, 256
          %s228 = scalar_lea.vmem [#allocation2], %s227
          %s229 = smul.u32 64, %s24
          %231 = vsyncadd %s225, 0
          %s232 = sadd.s32 %s26, %s229
          %s233 = smul.addr %s232, 4
          %s234 = scalar_lea.hbm %s0, %s233
          %s235 = sshll.u32 %s234, 4
          %s236 = int_to_ptr.hbm [resolvable:$true] %s235
          %s237 = sshll.u32 %s228, 4
          %s238 = int_to_ptr.vmem [resolvable:$true] %s237
          %243 = dma.hbm_to_vmem [thread:$0]  %s236, 4096, %s238, %s225, 64, 64, 4
        $region32: #{tpu_custom_call.1} parent=27 // pred_fallthru
          _
      $region28: #{tpu_custom_call.1} parent=5 // pred_fallthru
        _
      %p244 = scmp.le.s32.totalorder 1, %s17
      %p245 = scmp.lt.s32.totalorder %s17, 5
      %p246 = pnand %p244, %p245
      %p247 = pneg %p246
      // Predicated region
      $region33: #{tpu_custom_call.1} parent=5 // pred_check
        _
      $region34: #{tpu_custom_call.1} parent=5 // pred_check_branch
        %249 = sbr.rel (%p246) target = $region36
      $region35: #{tpu_custom_call.1} parent=5 // pred_region
        %s250 = ssub.s32 %s17, 1
        %s251 = sand.u32 %s51, 1
        %s252 = scalar_lea.sflag [#allocation3], %s251
        %s253 = sand.u32 %s51, 1
        %s254 = smul.addr %s253, 256
        %s255 = scalar_lea.vmem [#allocation2], %s254
        // Predicated region
        $region37: #{tpu_custom_call.1} parent=35 // pred_check
          %p256 = pneg %p64
        $region38: #{tpu_custom_call.1} parent=35 // pred_check_branch
          %258 = sbr.rel (%p256) target = $region40
        $region39: #{tpu_custom_call.1} parent=35 // pred_region
          %260 = dma.done %s252, 4096
        $region40: #{tpu_custom_call.1} parent=35 // pred_fallthru
          _
        // Predicated region
        $region41: #{tpu_custom_call.1} parent=35 // pred_check
          %p261 = pneg %p92
        $region42: #{tpu_custom_call.1} parent=35 // pred_check_branch
          %263 = sbr.rel (%p261) target = $region44
        $region43: #{tpu_custom_call.1} parent=35 // pred_region
          %265 = dma.done [#allocation6], 1024
        $region44: #{tpu_custom_call.1} parent=35 // pred_fallthru
          _
        %s266 = sand.u32 %s51, 1
        %s267 = scalar_lea.sflag [#allocation3], %s266
        %s268 = sand.u32 %s51, 1
        %s269 = smul.addr %s268, 256
        %s270 = scalar_lea.vmem [#allocation2], %s269
        %p271 = pneg %p64
        %p272 = pneg %p61
        %p273 = pneg %p92
        %p274 = pneg %p89
        %p275 = scmp.lt.s32.totalorder %s28, 0
        %s276 = scalar_select %p275, %s28, 0
        %s277 = scalar_lea.vmem %s2, %s276
        %p278 = pneg %p118
        %p279 = pneg %p115
        %p280 = scmp.lt.s32.totalorder %s28, 0
        %s281 = scalar_select %p280, %s28, 0
        %s282 = scalar_lea.vmem %s3, %s281
        %p283 = pneg %p144
        %p284 = pneg %p141
        %p285 = pneg %p172
        %p286 = pneg %p169
        %s287 = sand.u32 %s159, 1
        %s288 = scalar_lea.sflag [#allocation4], %s287
        %s289 = sand.u32 %s159, 1
        %s290 = smul.addr %s289, 256
        %s291 = scalar_lea.vmem [#allocation7], %s290
        %s292 = smul.u32 64, %s27
        %s293 = smul.u32 16, %s29
        %p294 = scmp.lt.s32.totalorder %s28, 0
        %s295 = scalar_select %p294, %s28, 0
        %s296 = scalar_lea.vmem %s2, %s295
        %p297 = scmp.lt.s32.totalorder %s28, 0
        %s298 = scalar_select %p297, %s28, 0
        %s299 = scalar_lea.vmem %s3, %s298
        %s300 = smul.u32 64, %s27
        %v301 = vld [vmem:[%s255] sm:$0xf]
        %v302 = vld [vmem:[%s255 + $0x4] sm:$0xf]
        %v303 = vld [vmem:[%s255 + $0x8] sm:$0xf]
        %v304 = vld [vmem:[%s255 + $0xc] sm:$0xf]
        %v305 = vld [vmem:[%s255 + $0x10] sm:$0xf]
        %v306 = vld [vmem:[%s255 + $0x14] sm:$0xf]
        %v307 = vld [vmem:[%s255 + $0x18] sm:$0xf]
        %v308 = vld [vmem:[%s255 + $0x1c] sm:$0xf]
        %v309 = vld [vmem:[%s255 + $0x20] sm:$0xf]
        %v310 = vld [vmem:[%s255 + $0x24] sm:$0xf]
        %v311 = vld [vmem:[%s255 + $0x28] sm:$0xf]
        %v312 = vld [vmem:[%s255 + $0x2c] sm:$0xf]
        %v313 = vld [vmem:[%s255 + $0x30] sm:$0xf]
        %v314 = vld [vmem:[%s255 + $0x34] sm:$0xf]
        %v315 = vld [vmem:[%s255 + $0x38] sm:$0xf]
        %v316 = vld [vmem:[%s255 + $0x3c] sm:$0xf]
        %v317 = vld [vmem:[%s255 + $0x40] sm:$0xf]
        %v318 = vld [vmem:[%s255 + $0x44] sm:$0xf]
        %v319 = vld [vmem:[%s255 + $0x48] sm:$0xf]
        %v320 = vld [vmem:[%s255 + $0x4c] sm:$0xf]
        %v321 = vld [vmem:[%s255 + $0x50] sm:$0xf]
        %v322 = vld [vmem:[%s255 + $0x54] sm:$0xf]
        %v323 = vld [vmem:[%s255 + $0x58] sm:$0xf]
        %v324 = vld [vmem:[%s255 + $0x5c] sm:$0xf]
        %v325 = vld [vmem:[%s255 + $0x60] sm:$0xf]
        %v326 = vld [vmem:[%s255 + $0x64] sm:$0xf]
        %v327 = vld [vmem:[%s255 + $0x68] sm:$0xf]
        %v328 = vld [vmem:[%s255 + $0x6c] sm:$0xf]
        %v329 = vld [vmem:[%s255 + $0x70] sm:$0xf]
        %v330 = vld [vmem:[%s255 + $0x74] sm:$0xf]
        %v331 = vld [vmem:[%s255 + $0x78] sm:$0xf]
        %v332 = vld [vmem:[%s255 + $0x7c] sm:$0xf]
        %v333 = vld [vmem:[%s255 + $0x80] sm:$0xf]
        %v334 = vld [vmem:[%s255 + $0x84] sm:$0xf]
        %v335 = vld [vmem:[%s255 + $0x88] sm:$0xf]
        %v336 = vld [vmem:[%s255 + $0x8c] sm:$0xf]
        %v337 = vld [vmem:[%s255 + $0x90] sm:$0xf]
        %v338 = vld [vmem:[%s255 + $0x94] sm:$0xf]
        %v339 = vld [vmem:[%s255 + $0x98] sm:$0xf]
        %v340 = vld [vmem:[%s255 + $0x9c] sm:$0xf]
        %v341 = vld [vmem:[%s255 + $0xa0] sm:$0xf]
        %v342 = vld [vmem:[%s255 + $0xa4] sm:$0xf]
        %v343 = vld [vmem:[%s255 + $0xa8] sm:$0xf]
        %v344 = vld [vmem:[%s255 + $0xac] sm:$0xf]
        %v345 = vld [vmem:[%s255 + $0xb0] sm:$0xf]
        %v346 = vld [vmem:[%s255 + $0xb4] sm:$0xf]
        %v347 = vld [vmem:[%s255 + $0xb8] sm:$0xf]
        %v348 = vld [vmem:[%s255 + $0xbc] sm:$0xf]
        %v349 = vld [vmem:[%s255 + $0xc0] sm:$0xf]
        %v350 = vld [vmem:[%s255 + $0xc4] sm:$0xf]
        %v351 = vld [vmem:[%s255 + $0xc8] sm:$0xf]
        %v352 = vld [vmem:[%s255 + $0xcc] sm:$0xf]
        %v353 = vld [vmem:[%s255 + $0xd0] sm:$0xf]
        %v354 = vld [vmem:[%s255 + $0xd4] sm:$0xf]
        %v355 = vld [vmem:[%s255 + $0xd8] sm:$0xf]
        %v356 = vld [vmem:[%s255 + $0xdc] sm:$0xf]
        %v357 = vld [vmem:[%s255 + $0xe0] sm:$0xf]
        %v358 = vld [vmem:[%s255 + $0xe4] sm:$0xf]
        %v359 = vld [vmem:[%s255 + $0xe8] sm:$0xf]
        %v360 = vld [vmem:[%s255 + $0xec] sm:$0xf]
        %v361 = vld [vmem:[%s255 + $0xf0] sm:$0xf]
        %v362 = vld [vmem:[%s255 + $0xf4] sm:$0xf]
        %v363 = vld [vmem:[%s255 + $0xf8] sm:$0xf]
        %v364 = vld [vmem:[%s255 + $0xfc] sm:$0xf]
        %v365 = vld [vmem:[#allocation5] sm:$0xf]
        %v366 = vld [vmem:[#allocation5 + $0x4] sm:$0xf]
        %v367 = vld [vmem:[#allocation5 + $0x8] sm:$0xf]
        %v368 = vld [vmem:[#allocation5 + $0xc] sm:$0xf]
        %v369 = vld [vmem:[#allocation5 + $0x10] sm:$0xf]
        %v370 = vld [vmem:[#allocation5 + $0x14] sm:$0xf]
        %v371 = vld [vmem:[#allocation5 + $0x18] sm:$0xf]
        %v372 = vld [vmem:[#allocation5 + $0x1c] sm:$0xf]
        %v373 = vld [vmem:[#allocation5 + $0x20] sm:$0xf]
        %v374 = vld [vmem:[#allocation5 + $0x24] sm:$0xf]
        %v375 = vld [vmem:[#allocation5 + $0x28] sm:$0xf]
        %v376 = vld [vmem:[#allocation5 + $0x2c] sm:$0xf]
        %v377 = vld [vmem:[#allocation5 + $0x30] sm:$0xf]
        %v378 = vld [vmem:[#allocation5 + $0x34] sm:$0xf]
        %v379 = vld [vmem:[#allocation5 + $0x38] sm:$0xf]
        %v380 = vld [vmem:[#allocation5 + $0x3c] sm:$0xf]
        %v445 = vunpack.c.l.b16 %v301
        %v446 = vunpack.c.l.b16 %v302
        %v447 = vunpack.c.l.b16 %v303
        %v448 = vunpack.c.l.b16 %v304
        %v449 = vunpack.c.l.b16 %v305
        %v450 = vunpack.c.l.b16 %v306
        %v451 = vunpack.c.l.b16 %v307
        %v452 = vunpack.c.l.b16 %v308
        %v453 = vunpack.c.l.b16 %v309
        %v454 = vunpack.c.l.b16 %v310
        %v455 = vunpack.c.l.b16 %v311
        %v456 = vunpack.c.l.b16 %v312
        %v457 = vunpack.c.l.b16 %v313
        %v458 = vunpack.c.l.b16 %v314
        %v459 = vunpack.c.l.b16 %v315
        %v460 = vunpack.c.l.b16 %v316
        %v461 = vunpack.c.l.b16 %v317
        %v462 = vunpack.c.l.b16 %v318
        %v463 = vunpack.c.l.b16 %v319
        %v464 = vunpack.c.l.b16 %v320
        %v465 = vunpack.c.l.b16 %v321
        %v466 = vunpack.c.l.b16 %v322
        %v467 = vunpack.c.l.b16 %v323
        %v468 = vunpack.c.l.b16 %v324
        %v469 = vunpack.c.l.b16 %v325
        %v470 = vunpack.c.l.b16 %v326
        %v471 = vunpack.c.l.b16 %v327
        %v472 = vunpack.c.l.b16 %v328
        %v473 = vunpack.c.l.b16 %v329
        %v474 = vunpack.c.l.b16 %v330
        %v475 = vunpack.c.l.b16 %v331
        %v476 = vunpack.c.l.b16 %v332
        %v477 = vunpack.c.l.b16 %v333
        %v478 = vunpack.c.l.b16 %v334
        %v479 = vunpack.c.l.b16 %v335
        %v480 = vunpack.c.l.b16 %v336
        %v481 = vunpack.c.l.b16 %v337
        %v482 = vunpack.c.l.b16 %v338
        %v483 = vunpack.c.l.b16 %v339
        %v484 = vunpack.c.l.b16 %v340
        %v485 = vunpack.c.l.b16 %v341
        %v486 = vunpack.c.l.b16 %v342
        %v487 = vunpack.c.l.b16 %v343
        %v488 = vunpack.c.l.b16 %v344
        %v489 = vunpack.c.l.b16 %v345
        %v490 = vunpack.c.l.b16 %v346
        %v491 = vunpack.c.l.b16 %v347
        %v492 = vunpack.c.l.b16 %v348
        %v493 = vunpack.c.l.b16 %v349
        %v494 = vunpack.c.l.b16 %v350
        %v495 = vunpack.c.l.b16 %v351
        %v496 = vunpack.c.l.b16 %v352
        %v497 = vunpack.c.l.b16 %v353
        %v498 = vunpack.c.l.b16 %v354
        %v499 = vunpack.c.l.b16 %v355
        %v500 = vunpack.c.l.b16 %v356
        %v501 = vunpack.c.l.b16 %v357
        %v502 = vunpack.c.l.b16 %v358
        %v503 = vunpack.c.l.b16 %v359
        %v504 = vunpack.c.l.b16 %v360
        %v505 = vunpack.c.l.b16 %v361
        %v506 = vunpack.c.l.b16 %v362
        %v507 = vunpack.c.l.b16 %v363
        %v508 = vunpack.c.l.b16 %v364
        %v509 = vpack.c.b16 %v446, %v445
        %v510 = vpack.c.b16 %v448, %v447
        %v511 = vpack.c.b16 %v450, %v449
        %v512 = vpack.c.b16 %v452, %v451
        %v513 = vpack.c.b16 %v454, %v453
        %v514 = vpack.c.b16 %v456, %v455
        %v515 = vpack.c.b16 %v458, %v457
        %v516 = vpack.c.b16 %v460, %v459
        %v517 = vpack.c.b16 %v462, %v461
        %v518 = vpack.c.b16 %v464, %v463
        %v519 = vpack.c.b16 %v466, %v465
        %v520 = vpack.c.b16 %v468, %v467
        %v521 = vpack.c.b16 %v470, %v469
        %v522 = vpack.c.b16 %v472, %v471
        %v523 = vpack.c.b16 %v474, %v473
        %v524 = vpack.c.b16 %v476, %v475
        %v525 = vpack.c.b16 %v478, %v477
        %v526 = vpack.c.b16 %v480, %v479
        %v527 = vpack.c.b16 %v482, %v481
        %v528 = vpack.c.b16 %v484, %v483
        %v529 = vpack.c.b16 %v486, %v485
        %v530 = vpack.c.b16 %v488, %v487
        %v531 = vpack.c.b16 %v490, %v489
        %v532 = vpack.c.b16 %v492, %v491
        %v533 = vpack.c.b16 %v494, %v493
        %v534 = vpack.c.b16 %v496, %v495
        %v535 = vpack.c.b16 %v498, %v497
        %v536 = vpack.c.b16 %v500, %v499
        %v537 = vpack.c.b16 %v502, %v501
        %v538 = vpack.c.b16 %v504, %v503
        %v539 = vpack.c.b16 %v506, %v505
        %v540 = vpack.c.b16 %v508, %v507
        %v589 = vunpack.c.l.b16 %v365
        %v590 = vunpack.c.l.b16 %v366
        %v591 = vunpack.c.l.b16 %v367
        %v592 = vunpack.c.l.b16 %v368
        %v593 = vunpack.c.l.b16 %v369
        %v594 = vunpack.c.l.b16 %v370
        %v595 = vunpack.c.l.b16 %v371
        %v596 = vunpack.c.l.b16 %v372
        %v597 = vunpack.c.l.b16 %v373
        %v598 = vunpack.c.l.b16 %v374
        %v599 = vunpack.c.l.b16 %v375
        %v600 = vunpack.c.l.b16 %v376
        %v601 = vunpack.c.l.b16 %v377
        %v602 = vunpack.c.l.b16 %v378
        %v603 = vunpack.c.l.b16 %v379
        %v604 = vunpack.c.l.b16 %v380
        %v605 = vpack.c.b16 %v590, %v589
        %v606 = vpack.c.b16 %v592, %v591
        %v607 = vpack.c.b16 %v594, %v593
        %v608 = vpack.c.b16 %v596, %v595
        %v609 = vpack.c.b16 %v598, %v597
        %v610 = vpack.c.b16 %v600, %v599
        %v611 = vpack.c.b16 %v602, %v601
        %v612 = vpack.c.b16 %v604, %v603
        %621 = vmatpush.bf16.msra.mxu0 %v612
        %622 = vmatpush.bf16.msra.mxu0 %v611
        %623 = vmatpush.bf16.msra.mxu0 %v610
        %624 = vmatpush.bf16.msra.mxu0 %v609
        %625 = vmatpush.bf16.msra.mxu0 %v608
        %626 = vmatpush.bf16.msra.mxu0 %v607
        %627 = vmatpush.bf16.msra.mxu0 %v606
        %628 = vmatpush.bf16.msra.mxu0 %v605
        %629 = vmatmul.bf16.gmra.mxu0 %v509
        %v630 = vpop.f32.mrf.mxu0
        %v631 = vadd.f32 0.0, %v630
        %v632 = vpop.f32.mrf.mxu0
        %v633 = vadd.f32 0.0, %v632
        %634 = vmatmul.bf16.gmra.mxu0 %v510
        %v635 = vpop.f32.mrf.mxu0
        %v636 = vadd.f32 0.0, %v635
        %v637 = vpop.f32.mrf.mxu0
        %v638 = vadd.f32 0.0, %v637
        %639 = vmatmul.bf16.gmra.mxu0 %v511
        %v640 = vpop.f32.mrf.mxu0
        %v641 = vadd.f32 0.0, %v640
        %v642 = vpop.f32.mrf.mxu0
        %v643 = vadd.f32 0.0, %v642
        %644 = vmatmul.bf16.gmra.mxu0 %v512
        %v645 = vpop.f32.mrf.mxu0
        %v646 = vadd.f32 0.0, %v645
        %v647 = vpop.f32.mrf.mxu0
        %v648 = vadd.f32 0.0, %v647
        %649 = vmatmul.bf16.gmra.mxu0 %v513
        %v650 = vpop.f32.mrf.mxu0
        %v651 = vadd.f32 0.0, %v650
        %v652 = vpop.f32.mrf.mxu0
        %v653 = vadd.f32 0.0, %v652
        %654 = vmatmul.bf16.gmra.mxu0 %v514
        %v655 = vpop.f32.mrf.mxu0
        %v656 = vadd.f32 0.0, %v655
        %v657 = vpop.f32.mrf.mxu0
        %v658 = vadd.f32 0.0, %v657
        %659 = vmatmul.bf16.gmra.mxu0 %v515
        %v660 = vpop.f32.mrf.mxu0
        %v661 = vadd.f32 0.0, %v660
        %v662 = vpop.f32.mrf.mxu0
        %v663 = vadd.f32 0.0, %v662
        %664 = vmatmul.bf16.gmra.mxu0 %v516
        %v665 = vpop.f32.mrf.mxu0
        %v666 = vadd.f32 0.0, %v665
        %v667 = vpop.f32.mrf.mxu0
        %v668 = vadd.f32 0.0, %v667
        %669 = vmatmul.bf16.gmra.mxu0 %v517
        %v670 = vpop.f32.mrf.mxu0
        %v671 = vadd.f32 0.0, %v670
        %v672 = vpop.f32.mrf.mxu0
        %v673 = vadd.f32 0.0, %v672
        %674 = vmatmul.bf16.gmra.mxu0 %v518
        %v675 = vpop.f32.mrf.mxu0
        %v676 = vadd.f32 0.0, %v675
        %v677 = vpop.f32.mrf.mxu0
        %v678 = vadd.f32 0.0, %v677
        %679 = vmatmul.bf16.gmra.mxu0 %v519
        %v680 = vpop.f32.mrf.mxu0
        %v681 = vadd.f32 0.0, %v680
        %v682 = vpop.f32.mrf.mxu0
        %v683 = vadd.f32 0.0, %v682
        %684 = vmatmul.bf16.gmra.mxu0 %v520
        %v685 = vpop.f32.mrf.mxu0
        %v686 = vadd.f32 0.0, %v685
        %v687 = vpop.f32.mrf.mxu0
        %v688 = vadd.f32 0.0, %v687
        %689 = vmatmul.bf16.gmra.mxu0 %v521
        %v690 = vpop.f32.mrf.mxu0
        %v691 = vadd.f32 0.0, %v690
        %v692 = vpop.f32.mrf.mxu0
        %v693 = vadd.f32 0.0, %v692
        %694 = vmatmul.bf16.gmra.mxu0 %v522
        %v695 = vpop.f32.mrf.mxu0
        %v696 = vadd.f32 0.0, %v695
        %v697 = vpop.f32.mrf.mxu0
        %v698 = vadd.f32 0.0, %v697
        %699 = vmatmul.bf16.gmra.mxu0 %v523
        %v700 = vpop.f32.mrf.mxu0
        %v701 = vadd.f32 0.0, %v700
        %v702 = vpop.f32.mrf.mxu0
        %v703 = vadd.f32 0.0, %v702
        %704 = vmatmul.bf16.gmra.mxu0 %v524
        %v705 = vpop.f32.mrf.mxu0
        %v706 = vadd.f32 0.0, %v705
        %v707 = vpop.f32.mrf.mxu0
        %v708 = vadd.f32 0.0, %v707
        %709 = vmatmul.bf16.gmra.mxu0 %v525
        %v710 = vpop.f32.mrf.mxu0
        %v711 = vadd.f32 0.0, %v710
        %v712 = vpop.f32.mrf.mxu0
        %v713 = vadd.f32 0.0, %v712
        %714 = vmatmul.bf16.gmra.mxu0 %v526
        %v715 = vpop.f32.mrf.mxu0
        %v716 = vadd.f32 0.0, %v715
        %v717 = vpop.f32.mrf.mxu0
        %v718 = vadd.f32 0.0, %v717
        %719 = vmatmul.bf16.gmra.mxu0 %v527
        %v720 = vpop.f32.mrf.mxu0
        %v721 = vadd.f32 0.0, %v720
        %v722 = vpop.f32.mrf.mxu0
        %v723 = vadd.f32 0.0, %v722
        %724 = vmatmul.bf16.gmra.mxu0 %v528
        %v725 = vpop.f32.mrf.mxu0
        %v726 = vadd.f32 0.0, %v725
        %v727 = vpop.f32.mrf.mxu0
        %v728 = vadd.f32 0.0, %v727
        %729 = vmatmul.bf16.gmra.mxu0 %v529
        %v730 = vpop.f32.mrf.mxu0
        %v731 = vadd.f32 0.0, %v730
        %v732 = vpop.f32.mrf.mxu0
        %v733 = vadd.f32 0.0, %v732
        %734 = vmatmul.bf16.gmra.mxu0 %v530
        %v735 = vpop.f32.mrf.mxu0
        %v736 = vadd.f32 0.0, %v735
        %v737 = vpop.f32.mrf.mxu0
        %v738 = vadd.f32 0.0, %v737
        %739 = vmatmul.bf16.gmra.mxu0 %v531
        %v740 = vpop.f32.mrf.mxu0
        %v741 = vadd.f32 0.0, %v740
        %v742 = vpop.f32.mrf.mxu0
        %v743 = vadd.f32 0.0, %v742
        %744 = vmatmul.bf16.gmra.mxu0 %v532
        %v745 = vpop.f32.mrf.mxu0
        %v746 = vadd.f32 0.0, %v745
        %v747 = vpop.f32.mrf.mxu0
        %v748 = vadd.f32 0.0, %v747
        %749 = vmatmul.bf16.gmra.mxu0 %v533
        %v750 = vpop.f32.mrf.mxu0
        %v751 = vadd.f32 0.0, %v750
        %v752 = vpop.f32.mrf.mxu0
        %v753 = vadd.f32 0.0, %v752
        %754 = vmatmul.bf16.gmra.mxu0 %v534
        %v755 = vpop.f32.mrf.mxu0
        %v756 = vadd.f32 0.0, %v755
        %v757 = vpop.f32.mrf.mxu0
        %v758 = vadd.f32 0.0, %v757
        %759 = vmatmul.bf16.gmra.mxu0 %v535
        %v760 = vpop.f32.mrf.mxu0
        %v761 = vadd.f32 0.0, %v760
        %v762 = vpop.f32.mrf.mxu0
        %v763 = vadd.f32 0.0, %v762
        %764 = vmatmul.bf16.gmra.mxu0 %v536
        %v765 = vpop.f32.mrf.mxu0
        %v766 = vadd.f32 0.0, %v765
        %v767 = vpop.f32.mrf.mxu0
        %v768 = vadd.f32 0.0, %v767
        %769 = vmatmul.bf16.gmra.mxu0 %v537
        %v770 = vpop.f32.mrf.mxu0
        %v771 = vadd.f32 0.0, %v770
        %v772 = vpop.f32.mrf.mxu0
        %v773 = vadd.f32 0.0, %v772
        %774 = vmatmul.bf16.gmra.mxu0 %v538
        %v775 = vpop.f32.mrf.mxu0
        %v776 = vadd.f32 0.0, %v775
        %v777 = vpop.f32.mrf.mxu0
        %v778 = vadd.f32 0.0, %v777
        %779 = vmatmul.bf16.gmra.mxu0 %v539
        %v780 = vpop.f32.mrf.mxu0
        %v781 = vadd.f32 0.0, %v780
        %v782 = vpop.f32.mrf.mxu0
        %v783 = vadd.f32 0.0, %v782
        %784 = vmatmul.bf16.gmra.mxu0 %v540
        %v785 = vpop.f32.mrf.mxu0
        %v786 = vadd.f32 0.0, %v785
        %v787 = vpop.f32.mrf.mxu0
        %v788 = vadd.f32 0.0, %v787
        %789 = vdwg.mxu0
        %v790 = vld [vmem:[%s296] sm:$0x1]
        %v792 = vperm.slane %v790, 0
        %v794 = vmul.f32 %v631, %v792
        %v795 = vmul.f32 %v633, %v792
        %v796 = vmul.f32 %v636, %v792
        %v797 = vmul.f32 %v638, %v792
        %v798 = vmul.f32 %v641, %v792
        %v799 = vmul.f32 %v643, %v792
        %v800 = vmul.f32 %v646, %v792
        %v801 = vmul.f32 %v648, %v792
        %v802 = vmul.f32 %v651, %v792
        %v803 = vmul.f32 %v653, %v792
        %v804 = vmul.f32 %v656, %v792
        %v805 = vmul.f32 %v658, %v792
        %v806 = vmul.f32 %v661, %v792
        %v807 = vmul.f32 %v663, %v792
        %v808 = vmul.f32 %v666, %v792
        %v809 = vmul.f32 %v668, %v792
        %v810 = vmul.f32 %v671, %v792
        %v811 = vmul.f32 %v673, %v792
        %v812 = vmul.f32 %v676, %v792
        %v813 = vmul.f32 %v678, %v792
        %v814 = vmul.f32 %v681, %v792
        %v815 = vmul.f32 %v683, %v792
        %v816 = vmul.f32 %v686, %v792
        %v817 = vmul.f32 %v688, %v792
        %v818 = vmul.f32 %v691, %v792
        %v819 = vmul.f32 %v693, %v792
        %v820 = vmul.f32 %v696, %v792
        %v821 = vmul.f32 %v698, %v792
        %v822 = vmul.f32 %v701, %v792
        %v823 = vmul.f32 %v703, %v792
        %v824 = vmul.f32 %v706, %v792
        %v825 = vmul.f32 %v708, %v792
        %v826 = vmul.f32 %v711, %v792
        %v827 = vmul.f32 %v713, %v792
        %v828 = vmul.f32 %v716, %v792
        %v829 = vmul.f32 %v718, %v792
        %v830 = vmul.f32 %v721, %v792
        %v831 = vmul.f32 %v723, %v792
        %v832 = vmul.f32 %v726, %v792
        %v833 = vmul.f32 %v728, %v792
        %v834 = vmul.f32 %v731, %v792
        %v835 = vmul.f32 %v733, %v792
        %v836 = vmul.f32 %v736, %v792
        %v837 = vmul.f32 %v738, %v792
        %v838 = vmul.f32 %v741, %v792
        %v839 = vmul.f32 %v743, %v792
        %v840 = vmul.f32 %v746, %v792
        %v841 = vmul.f32 %v748, %v792
        %v842 = vmul.f32 %v751, %v792
        %v843 = vmul.f32 %v753, %v792
        %v844 = vmul.f32 %v756, %v792
        %v845 = vmul.f32 %v758, %v792
        %v846 = vmul.f32 %v761, %v792
        %v847 = vmul.f32 %v763, %v792
        %v848 = vmul.f32 %v766, %v792
        %v849 = vmul.f32 %v768, %v792
        %v850 = vmul.f32 %v771, %v792
        %v851 = vmul.f32 %v773, %v792
        %v852 = vmul.f32 %v776, %v792
        %v853 = vmul.f32 %v778, %v792
        %v854 = vmul.f32 %v781, %v792
        %v855 = vmul.f32 %v783, %v792
        %v856 = vmul.f32 %v786, %v792
        %v857 = vmul.f32 %v788, %v792
        %v858 = vld [vmem:[%s299] sm:$0x1]
        %v860 = vperm.slane %v858, 0
        %v862 = vadd.f32 %v794, %v860
        %v863 = vadd.f32 %v795, %v860
        %v864 = vadd.f32 %v796, %v860
        %v865 = vadd.f32 %v797, %v860
        %v866 = vadd.f32 %v798, %v860
        %v867 = vadd.f32 %v799, %v860
        %v868 = vadd.f32 %v800, %v860
        %v869 = vadd.f32 %v801, %v860
        %v870 = vadd.f32 %v802, %v860
        %v871 = vadd.f32 %v803, %v860
        %v872 = vadd.f32 %v804, %v860
        %v873 = vadd.f32 %v805, %v860
        %v874 = vadd.f32 %v806, %v860
        %v875 = vadd.f32 %v807, %v860
        %v876 = vadd.f32 %v808, %v860
        %v877 = vadd.f32 %v809, %v860
        %v878 = vadd.f32 %v810, %v860
        %v879 = vadd.f32 %v811, %v860
        %v880 = vadd.f32 %v812, %v860
        %v881 = vadd.f32 %v813, %v860
        %v882 = vadd.f32 %v814, %v860
        %v883 = vadd.f32 %v815, %v860
        %v884 = vadd.f32 %v816, %v860
        %v885 = vadd.f32 %v817, %v860
        %v886 = vadd.f32 %v818, %v860
        %v887 = vadd.f32 %v819, %v860
        %v888 = vadd.f32 %v820, %v860
        %v889 = vadd.f32 %v821, %v860
        %v890 = vadd.f32 %v822, %v860
        %v891 = vadd.f32 %v823, %v860
        %v892 = vadd.f32 %v824, %v860
        %v893 = vadd.f32 %v825, %v860
        %v894 = vadd.f32 %v826, %v860
        %v895 = vadd.f32 %v827, %v860
        %v896 = vadd.f32 %v828, %v860
        %v897 = vadd.f32 %v829, %v860
        %v898 = vadd.f32 %v830, %v860
        %v899 = vadd.f32 %v831, %v860
        %v900 = vadd.f32 %v832, %v860
        %v901 = vadd.f32 %v833, %v860
        %v902 = vadd.f32 %v834, %v860
        %v903 = vadd.f32 %v835, %v860
        %v904 = vadd.f32 %v836, %v860
        %v905 = vadd.f32 %v837, %v860
        %v906 = vadd.f32 %v838, %v860
        %v907 = vadd.f32 %v839, %v860
        %v908 = vadd.f32 %v840, %v860
        %v909 = vadd.f32 %v841, %v860
        %v910 = vadd.f32 %v842, %v860
        %v911 = vadd.f32 %v843, %v860
        %v912 = vadd.f32 %v844, %v860
        %v913 = vadd.f32 %v845, %v860
        %v914 = vadd.f32 %v846, %v860
        %v915 = vadd.f32 %v847, %v860
        %v916 = vadd.f32 %v848, %v860
        %v917 = vadd.f32 %v849, %v860
        %v918 = vadd.f32 %v850, %v860
        %v919 = vadd.f32 %v851, %v860
        %v920 = vadd.f32 %v852, %v860
        %v921 = vadd.f32 %v853, %v860
        %v922 = vadd.f32 %v854, %v860
        %v923 = vadd.f32 %v855, %v860
        %v924 = vadd.f32 %v856, %v860
        %v925 = vadd.f32 %v857, %v860
        %vm926 = vcmp.gt.f32.partialorder %v862, 0.0
        %vm927 = vcmp.gt.f32.partialorder %v863, 0.0
        %vm928 = vcmp.gt.f32.partialorder %v864, 0.0
        %vm929 = vcmp.gt.f32.partialorder %v865, 0.0
        %vm930 = vcmp.gt.f32.partialorder %v866, 0.0
        %vm931 = vcmp.gt.f32.partialorder %v867, 0.0
        %vm932 = vcmp.gt.f32.partialorder %v868, 0.0
        %vm933 = vcmp.gt.f32.partialorder %v869, 0.0
        %vm934 = vcmp.gt.f32.partialorder %v870, 0.0
        %vm935 = vcmp.gt.f32.partialorder %v871, 0.0
        %vm936 = vcmp.gt.f32.partialorder %v872, 0.0
        %vm937 = vcmp.gt.f32.partialorder %v873, 0.0
        %vm938 = vcmp.gt.f32.partialorder %v874, 0.0
        %vm939 = vcmp.gt.f32.partialorder %v875, 0.0
        %vm940 = vcmp.gt.f32.partialorder %v876, 0.0
        %vm941 = vcmp.gt.f32.partialorder %v877, 0.0
        %vm942 = vcmp.gt.f32.partialorder %v878, 0.0
        %vm943 = vcmp.gt.f32.partialorder %v879, 0.0
        %vm944 = vcmp.gt.f32.partialorder %v880, 0.0
        %vm945 = vcmp.gt.f32.partialorder %v881, 0.0
        %vm946 = vcmp.gt.f32.partialorder %v882, 0.0
        %vm947 = vcmp.gt.f32.partialorder %v883, 0.0
        %vm948 = vcmp.gt.f32.partialorder %v884, 0.0
        %vm949 = vcmp.gt.f32.partialorder %v885, 0.0
        %vm950 = vcmp.gt.f32.partialorder %v886, 0.0
        %vm951 = vcmp.gt.f32.partialorder %v887, 0.0
        %vm952 = vcmp.gt.f32.partialorder %v888, 0.0
        %vm953 = vcmp.gt.f32.partialorder %v889, 0.0
        %vm954 = vcmp.gt.f32.partialorder %v890, 0.0
        %vm955 = vcmp.gt.f32.partialorder %v891, 0.0
        %vm956 = vcmp.gt.f32.partialorder %v892, 0.0
        %vm957 = vcmp.gt.f32.partialorder %v893, 0.0
        %vm958 = vcmp.gt.f32.partialorder %v894, 0.0
        %vm959 = vcmp.gt.f32.partialorder %v895, 0.0
        %vm960 = vcmp.gt.f32.partialorder %v896, 0.0
        %vm961 = vcmp.gt.f32.partialorder %v897, 0.0
        %vm962 = vcmp.gt.f32.partialorder %v898, 0.0
        %vm963 = vcmp.gt.f32.partialorder %v899, 0.0
        %vm964 = vcmp.gt.f32.partialorder %v900, 0.0
        %vm965 = vcmp.gt.f32.partialorder %v901, 0.0
        %vm966 = vcmp.gt.f32.partialorder %v902, 0.0
        %vm967 = vcmp.gt.f32.partialorder %v903, 0.0
        %vm968 = vcmp.gt.f32.partialorder %v904, 0.0
        %vm969 = vcmp.gt.f32.partialorder %v905, 0.0
        %vm970 = vcmp.gt.f32.partialorder %v906, 0.0
        %vm971 = vcmp.gt.f32.partialorder %v907, 0.0
        %vm972 = vcmp.gt.f32.partialorder %v908, 0.0
        %vm973 = vcmp.gt.f32.partialorder %v909, 0.0
        %vm974 = vcmp.gt.f32.partialorder %v910, 0.0
        %vm975 = vcmp.gt.f32.partialorder %v911, 0.0
        %vm976 = vcmp.gt.f32.partialorder %v912, 0.0
        %vm977 = vcmp.gt.f32.partialorder %v913, 0.0
        %vm978 = vcmp.gt.f32.partialorder %v914, 0.0
        %vm979 = vcmp.gt.f32.partialorder %v915, 0.0
        %vm980 = vcmp.gt.f32.partialorder %v916, 0.0
        %vm981 = vcmp.gt.f32.partialorder %v917, 0.0
        %vm982 = vcmp.gt.f32.partialorder %v918, 0.0
        %vm983 = vcmp.gt.f32.partialorder %v919, 0.0
        %vm984 = vcmp.gt.f32.partialorder %v920, 0.0
        %vm985 = vcmp.gt.f32.partialorder %v921, 0.0
        %vm986 = vcmp.gt.f32.partialorder %v922, 0.0
        %vm987 = vcmp.gt.f32.partialorder %v923, 0.0
        %vm988 = vcmp.gt.f32.partialorder %v924, 0.0
        %vm989 = vcmp.gt.f32.partialorder %v925, 0.0
        %v990 = vmul.f32 %v862, 0.1
        %v991 = vmul.f32 %v863, 0.1
        %v992 = vmul.f32 %v864, 0.1
        %v993 = vmul.f32 %v865, 0.1
        %v994 = vmul.f32 %v866, 0.1
        %v995 = vmul.f32 %v867, 0.1
        %v996 = vmul.f32 %v868, 0.1
        %v997 = vmul.f32 %v869, 0.1
        %v998 = vmul.f32 %v870, 0.1
        %v999 = vmul.f32 %v871, 0.1
        %v1000 = vmul.f32 %v872, 0.1
        %v1001 = vmul.f32 %v873, 0.1
        %v1002 = vmul.f32 %v874, 0.1
        %v1003 = vmul.f32 %v875, 0.1
        %v1004 = vmul.f32 %v876, 0.1
        %v1005 = vmul.f32 %v877, 0.1
        %v1006 = vmul.f32 %v878, 0.1
        %v1007 = vmul.f32 %v879, 0.1
        %v1008 = vmul.f32 %v880, 0.1
        %v1009 = vmul.f32 %v881, 0.1
        %v1010 = vmul.f32 %v882, 0.1
        %v1011 = vmul.f32 %v883, 0.1
        %v1012 = vmul.f32 %v884, 0.1
        %v1013 = vmul.f32 %v885, 0.1
        %v1014 = vmul.f32 %v886, 0.1
        %v1015 = vmul.f32 %v887, 0.1
        %v1016 = vmul.f32 %v888, 0.1
        %v1017 = vmul.f32 %v889, 0.1
        %v1018 = vmul.f32 %v890, 0.1
        %v1019 = vmul.f32 %v891, 0.1
        %v1020 = vmul.f32 %v892, 0.1
        %v1021 = vmul.f32 %v893, 0.1
        %v1022 = vmul.f32 %v894, 0.1
        %v1023 = vmul.f32 %v895, 0.1
        %v1024 = vmul.f32 %v896, 0.1
        %v1025 = vmul.f32 %v897, 0.1
        %v1026 = vmul.f32 %v898, 0.1
        %v1027 = vmul.f32 %v899, 0.1
        %v1028 = vmul.f32 %v900, 0.1
        %v1029 = vmul.f32 %v901, 0.1
        %v1030 = vmul.f32 %v902, 0.1
        %v1031 = vmul.f32 %v903, 0.1
        %v1032 = vmul.f32 %v904, 0.1
        %v1033 = vmul.f32 %v905, 0.1
        %v1034 = vmul.f32 %v906, 0.1
        %v1035 = vmul.f32 %v907, 0.1
        %v1036 = vmul.f32 %v908, 0.1
        %v1037 = vmul.f32 %v909, 0.1
        %v1038 = vmul.f32 %v910, 0.1
        %v1039 = vmul.f32 %v911, 0.1
        %v1040 = vmul.f32 %v912, 0.1
        %v1041 = vmul.f32 %v913, 0.1
        %v1042 = vmul.f32 %v914, 0.1
        %v1043 = vmul.f32 %v915, 0.1
        %v1044 = vmul.f32 %v916, 0.1
        %v1045 = vmul.f32 %v917, 0.1
        %v1046 = vmul.f32 %v918, 0.1
        %v1047 = vmul.f32 %v919, 0.1
        %v1048 = vmul.f32 %v920, 0.1
        %v1049 = vmul.f32 %v921, 0.1
        %v1050 = vmul.f32 %v922, 0.1
        %v1051 = vmul.f32 %v923, 0.1
        %v1052 = vmul.f32 %v924, 0.1
        %v1053 = vmul.f32 %v925, 0.1
        %v1054 = vsel %vm926, %v862, %v990
        %v1055 = vsel %vm927, %v863, %v991
        %v1056 = vsel %vm928, %v864, %v992
        %v1057 = vsel %vm929, %v865, %v993
        %v1058 = vsel %vm930, %v866, %v994
        %v1059 = vsel %vm931, %v867, %v995
        %v1060 = vsel %vm932, %v868, %v996
        %v1061 = vsel %vm933, %v869, %v997
        %v1062 = vsel %vm934, %v870, %v998
        %v1063 = vsel %vm935, %v871, %v999
        %v1064 = vsel %vm936, %v872, %v1000
        %v1065 = vsel %vm937, %v873, %v1001
        %v1066 = vsel %vm938, %v874, %v1002
        %v1067 = vsel %vm939, %v875, %v1003
        %v1068 = vsel %vm940, %v876, %v1004
        %v1069 = vsel %vm941, %v877, %v1005
        %v1070 = vsel %vm942, %v878, %v1006
        %v1071 = vsel %vm943, %v879, %v1007
        %v1072 = vsel %vm944, %v880, %v1008
        %v1073 = vsel %vm945, %v881, %v1009
        %v1074 = vsel %vm946, %v882, %v1010
        %v1075 = vsel %vm947, %v883, %v1011
        %v1076 = vsel %vm948, %v884, %v1012
        %v1077 = vsel %vm949, %v885, %v1013
        %v1078 = vsel %vm950, %v886, %v1014
        %v1079 = vsel %vm951, %v887, %v1015
        %v1080 = vsel %vm952, %v888, %v1016
        %v1081 = vsel %vm953, %v889, %v1017
        %v1082 = vsel %vm954, %v890, %v1018
        %v1083 = vsel %vm955, %v891, %v1019
        %v1084 = vsel %vm956, %v892, %v1020
        %v1085 = vsel %vm957, %v893, %v1021
        %v1086 = vsel %vm958, %v894, %v1022
        %v1087 = vsel %vm959, %v895, %v1023
        %v1088 = vsel %vm960, %v896, %v1024
        %v1089 = vsel %vm961, %v897, %v1025
        %v1090 = vsel %vm962, %v898, %v1026
        %v1091 = vsel %vm963, %v899, %v1027
        %v1092 = vsel %vm964, %v900, %v1028
        %v1093 = vsel %vm965, %v901, %v1029
        %v1094 = vsel %vm966, %v902, %v1030
        %v1095 = vsel %vm967, %v903, %v1031
        %v1096 = vsel %vm968, %v904, %v1032
        %v1097 = vsel %vm969, %v905, %v1033
        %v1098 = vsel %vm970, %v906, %v1034
        %v1099 = vsel %vm971, %v907, %v1035
        %v1100 = vsel %vm972, %v908, %v1036
        %v1101 = vsel %vm973, %v909, %v1037
        %v1102 = vsel %vm974, %v910, %v1038
        %v1103 = vsel %vm975, %v911, %v1039
        %v1104 = vsel %vm976, %v912, %v1040
        %v1105 = vsel %vm977, %v913, %v1041
        %v1106 = vsel %vm978, %v914, %v1042
        %v1107 = vsel %vm979, %v915, %v1043
        %v1108 = vsel %vm980, %v916, %v1044
        %v1109 = vsel %vm981, %v917, %v1045
        %v1110 = vsel %vm982, %v918, %v1046
        %v1111 = vsel %vm983, %v919, %v1047
        %v1112 = vsel %vm984, %v920, %v1048
        %v1113 = vsel %vm985, %v921, %v1049
        %v1114 = vsel %vm986, %v922, %v1050
        %v1115 = vsel %vm987, %v923, %v1051
        %v1116 = vsel %vm988, %v924, %v1052
        %v1117 = vsel %vm989, %v925, %v1053
        %v1118 = vpack.c.bf16 %v1054, %v1054
        %v1119 = vpack.c.bf16 %v1055, %v1055
        %v1120 = vpack.c.bf16 %v1056, %v1056
        %v1121 = vpack.c.bf16 %v1057, %v1057
        %v1122 = vpack.c.bf16 %v1058, %v1058
        %v1123 = vpack.c.bf16 %v1059, %v1059
        %v1124 = vpack.c.bf16 %v1060, %v1060
        %v1125 = vpack.c.bf16 %v1061, %v1061
        %v1126 = vpack.c.bf16 %v1062, %v1062
        %v1127 = vpack.c.bf16 %v1063, %v1063
        %v1128 = vpack.c.bf16 %v1064, %v1064
        %v1129 = vpack.c.bf16 %v1065, %v1065
        %v1130 = vpack.c.bf16 %v1066, %v1066
        %v1131 = vpack.c.bf16 %v1067, %v1067
        %v1132 = vpack.c.bf16 %v1068, %v1068
        %v1133 = vpack.c.bf16 %v1069, %v1069
        %v1134 = vpack.c.bf16 %v1070, %v1070
        %v1135 = vpack.c.bf16 %v1071, %v1071
        %v1136 = vpack.c.bf16 %v1072, %v1072
        %v1137 = vpack.c.bf16 %v1073, %v1073
        %v1138 = vpack.c.bf16 %v1074, %v1074
        %v1139 = vpack.c.bf16 %v1075, %v1075
        %v1140 = vpack.c.bf16 %v1076, %v1076
        %v1141 = vpack.c.bf16 %v1077, %v1077
        %v1142 = vpack.c.bf16 %v1078, %v1078
        %v1143 = vpack.c.bf16 %v1079, %v1079
        %v1144 = vpack.c.bf16 %v1080, %v1080
        %v1145 = vpack.c.bf16 %v1081, %v1081
        %v1146 = vpack.c.bf16 %v1082, %v1082
        %v1147 = vpack.c.bf16 %v1083, %v1083
        %v1148 = vpack.c.bf16 %v1084, %v1084
        %v1149 = vpack.c.bf16 %v1085, %v1085
        %v1150 = vpack.c.bf16 %v1086, %v1086
        %v1151 = vpack.c.bf16 %v1087, %v1087
        %v1152 = vpack.c.bf16 %v1088, %v1088
        %v1153 = vpack.c.bf16 %v1089, %v1089
        %v1154 = vpack.c.bf16 %v1090, %v1090
        %v1155 = vpack.c.bf16 %v1091, %v1091
        %v1156 = vpack.c.bf16 %v1092, %v1092
        %v1157 = vpack.c.bf16 %v1093, %v1093
        %v1158 = vpack.c.bf16 %v1094, %v1094
        %v1159 = vpack.c.bf16 %v1095, %v1095
        %v1160 = vpack.c.bf16 %v1096, %v1096
        %v1161 = vpack.c.bf16 %v1097, %v1097
        %v1162 = vpack.c.bf16 %v1098, %v1098
        %v1163 = vpack.c.bf16 %v1099, %v1099
        %v1164 = vpack.c.bf16 %v1100, %v1100
        %v1165 = vpack.c.bf16 %v1101, %v1101
        %v1166 = vpack.c.bf16 %v1102, %v1102
        %v1167 = vpack.c.bf16 %v1103, %v1103
        %v1168 = vpack.c.bf16 %v1104, %v1104
        %v1169 = vpack.c.bf16 %v1105, %v1105
        %v1170 = vpack.c.bf16 %v1106, %v1106
        %v1171 = vpack.c.bf16 %v1107, %v1107
        %v1172 = vpack.c.bf16 %v1108, %v1108
        %v1173 = vpack.c.bf16 %v1109, %v1109
        %v1174 = vpack.c.bf16 %v1110, %v1110
        %v1175 = vpack.c.bf16 %v1111, %v1111
        %v1176 = vpack.c.bf16 %v1112, %v1112
        %v1177 = vpack.c.bf16 %v1113, %v1113
        %v1178 = vpack.c.bf16 %v1114, %v1114
        %v1179 = vpack.c.bf16 %v1115, %v1115
        %v1180 = vpack.c.bf16 %v1116, %v1116
        %v1181 = vpack.c.bf16 %v1117, %v1117
        %1182 = vst [vmem:[%s291] sm:$0xf] %v1118
        %1183 = vst [vmem:[%s291 + $0x4] sm:$0xf] %v1119
        %1184 = vst [vmem:[%s291 + $0x8] sm:$0xf] %v1120
        %1185 = vst [vmem:[%s291 + $0xc] sm:$0xf] %v1121
        %1186 = vst [vmem:[%s291 + $0x10] sm:$0xf] %v1122
        %1187 = vst [vmem:[%s291 + $0x14] sm:$0xf] %v1123
        %1188 = vst [vmem:[%s291 + $0x18] sm:$0xf] %v1124
        %1189 = vst [vmem:[%s291 + $0x1c] sm:$0xf] %v1125
        %1190 = vst [vmem:[%s291 + $0x20] sm:$0xf] %v1126
        %1191 = vst [vmem:[%s291 + $0x24] sm:$0xf] %v1127
        %1192 = vst [vmem:[%s291 + $0x28] sm:$0xf] %v1128
        %1193 = vst [vmem:[%s291 + $0x2c] sm:$0xf] %v1129
        %1194 = vst [vmem:[%s291 + $0x30] sm:$0xf] %v1130
        %1195 = vst [vmem:[%s291 + $0x34] sm:$0xf] %v1131
        %1196 = vst [vmem:[%s291 + $0x38] sm:$0xf] %v1132
        %1197 = vst [vmem:[%s291 + $0x3c] sm:$0xf] %v1133
        %1198 = vst [vmem:[%s291 + $0x40] sm:$0xf] %v1134
        %1199 = vst [vmem:[%s291 + $0x44] sm:$0xf] %v1135
        %1200 = vst [vmem:[%s291 + $0x48] sm:$0xf] %v1136
        %1201 = vst [vmem:[%s291 + $0x4c] sm:$0xf] %v1137
        %1202 = vst [vmem:[%s291 + $0x50] sm:$0xf] %v1138
        %1203 = vst [vmem:[%s291 + $0x54] sm:$0xf] %v1139
        %1204 = vst [vmem:[%s291 + $0x58] sm:$0xf] %v1140
        %1205 = vst [vmem:[%s291 + $0x5c] sm:$0xf] %v1141
        %1206 = vst [vmem:[%s291 + $0x60] sm:$0xf] %v1142
        %1207 = vst [vmem:[%s291 + $0x64] sm:$0xf] %v1143
        %1208 = vst [vmem:[%s291 + $0x68] sm:$0xf] %v1144
        %1209 = vst [vmem:[%s291 + $0x6c] sm:$0xf] %v1145
        %1210 = vst [vmem:[%s291 + $0x70] sm:$0xf] %v1146
        %1211 = vst [vmem:[%s291 + $0x74] sm:$0xf] %v1147
        %1212 = vst [vmem:[%s291 + $0x78] sm:$0xf] %v1148
        %1213 = vst [vmem:[%s291 + $0x7c] sm:$0xf] %v1149
        %1214 = vst [vmem:[%s291 + $0x80] sm:$0xf] %v1150
        %1215 = vst [vmem:[%s291 + $0x84] sm:$0xf] %v1151
        %1216 = vst [vmem:[%s291 + $0x88] sm:$0xf] %v1152
        %1217 = vst [vmem:[%s291 + $0x8c] sm:$0xf] %v1153
        %1218 = vst [vmem:[%s291 + $0x90] sm:$0xf] %v1154
        %1219 = vst [vmem:[%s291 + $0x94] sm:$0xf] %v1155
        %1220 = vst [vmem:[%s291 + $0x98] sm:$0xf] %v1156
        %1221 = vst [vmem:[%s291 + $0x9c] sm:$0xf] %v1157
        %1222 = vst [vmem:[%s291 + $0xa0] sm:$0xf] %v1158
        %1223 = vst [vmem:[%s291 + $0xa4] sm:$0xf] %v1159
        %1224 = vst [vmem:[%s291 + $0xa8] sm:$0xf] %v1160
        %1225 = vst [vmem:[%s291 + $0xac] sm:$0xf] %v1161
        %1226 = vst [vmem:[%s291 + $0xb0] sm:$0xf] %v1162
        %1227 = vst [vmem:[%s291 + $0xb4] sm:$0xf] %v1163
        %1228 = vst [vmem:[%s291 + $0xb8] sm:$0xf] %v1164
        %1229 = vst [vmem:[%s291 + $0xbc] sm:$0xf] %v1165
        %1230 = vst [vmem:[%s291 + $0xc0] sm:$0xf] %v1166
        %1231 = vst [vmem:[%s291 + $0xc4] sm:$0xf] %v1167
        %1232 = vst [vmem:[%s291 + $0xc8] sm:$0xf] %v1168
        %1233 = vst [vmem:[%s291 + $0xcc] sm:$0xf] %v1169
        %1234 = vst [vmem:[%s291 + $0xd0] sm:$0xf] %v1170
        %1235 = vst [vmem:[%s291 + $0xd4] sm:$0xf] %v1171
        %1236 = vst [vmem:[%s291 + $0xd8] sm:$0xf] %v1172
        %1237 = vst [vmem:[%s291 + $0xdc] sm:$0xf] %v1173
        %1238 = vst [vmem:[%s291 + $0xe0] sm:$0xf] %v1174
        %1239 = vst [vmem:[%s291 + $0xe4] sm:$0xf] %v1175
        %1240 = vst [vmem:[%s291 + $0xe8] sm:$0xf] %v1176
        %1241 = vst [vmem:[%s291 + $0xec] sm:$0xf] %v1177
        %1242 = vst [vmem:[%s291 + $0xf0] sm:$0xf] %v1178
        %1243 = vst [vmem:[%s291 + $0xf4] sm:$0xf] %v1179
        %1244 = vst [vmem:[%s291 + $0xf8] sm:$0xf] %v1180
        %1245 = vst [vmem:[%s291 + $0xfc] sm:$0xf] %v1181
        %s1246 = sand.u32 %s159, 1
        %s1247 = scalar_lea.sflag [#allocation4], %s1246
        %s1248 = sand.u32 %s159, 1
        %s1249 = smul.addr %s1248, 256
        %s1250 = scalar_lea.vmem [#allocation7], %s1249
        // Predicated region
        $region45: #{tpu_custom_call.1} parent=35 // pred_check
          %p1251 = pneg %p169
        $region46: #{tpu_custom_call.1} parent=35 // pred_check_branch
          %1253 = sbr.rel (%p1251) target = $region48
        $region47: #{tpu_custom_call.1} parent=35 // pred_region
          %s1254 = smul.u32 64, %s27
          %1256 = vsyncadd %s1247, 0
          %s1257 = sadd.s32 %s28, %s1254
          %s1258 = smul.addr %s1257, 4
          %s1259 = scalar_lea.hbm %s4, %s1258
          %s1260 = sshll.u32 %s1250, 4
          %s1261 = int_to_ptr.vmem [resolvable:$true] %s1260
          %s1262 = sshll.u32 %s1259, 4
          %s1263 = int_to_ptr.hbm [resolvable:$true] %s1262
          %1268 = dma.vmem_to_hbm [thread:$0]  %s1261, 4096, %s1263, %s1247, 64, 64, 4
        $region48: #{tpu_custom_call.1} parent=35 // pred_fallthru
          _
      $region36: #{tpu_custom_call.1} parent=5 // pred_fallthru
        _
      %p1269 = scmp.le.s32.totalorder 2, %s17
      // Predicated region
      $region49: #{tpu_custom_call.1} parent=5 // pred_check
        %p1270 = pneg %p1269
      $region50: #{tpu_custom_call.1} parent=5 // pred_check_branch
        %1272 = sbr.rel (%p1270) target = $region52
      $region51: #{tpu_custom_call.1} parent=5 // pred_region
        %s1273 = ssub.s32 %s17, 2
        // Predicated region
        $region53: #{tpu_custom_call.1} parent=51 // pred_check
          %p1274 = pneg %p175
        $region54: #{tpu_custom_call.1} parent=51 // pred_check_branch
          %1276 = sbr.rel (%p1274) target = $region56
        $region55: #{tpu_custom_call.1} parent=51 // pred_region
          %s1277 = sand.u32 %s160, 1
          %s1278 = scalar_lea.sflag [#allocation4], %s1277
          %s1279 = sand.u32 %s160, 1
          %s1280 = smul.addr %s1279, 256
          %s1281 = scalar_lea.vmem [#allocation7], %s1280
          %1283 = dma.done %s1278, 4096
        $region56: #{tpu_custom_call.1} parent=51 // pred_fallthru
          _
      $region52: #{tpu_custom_call.1} parent=5 // pred_fallthru
        _
    $region6: #{tpu_custom_call.1} parent=1 // loop_footer
      %s21 = sadd.s32 1, %s17
    $region7: #{tpu_custom_call.1} parent=1 // loop_footer_branch
      %16 = sbr.rel target = $region3
    $region8: #{tpu_custom_call.1} parent=1 // loop_exit
      _
    %1284 = vsyncpa [#allocation3], 1
    %s1285 = scalar_lea.sflag [#allocation3], 1
    %1286 = vsyncpa %s1285, 1
    %1287 = vsyncpa [#allocation6], 1
    %1288 = vsyncpa [#allocation4], 1
    %s1289 = scalar_lea.sflag [#allocation4], 1
    %1290 = vsyncpa %s1289, 1

</llo_original>
